<compile_context>
chip_gen: v5e
topology: v5e:2x2
jax: 0.10.0
libtpu: 0.0.40
codegen_flags: <defaults>
</compile_context>

<pallas_src>
import math

import jax
import jax.numpy as jnp
from jax import lax
from jax.experimental import pallas as pl
from jax.experimental.pallas import tpu as pltpu  # noqa: F401  (TPU backend)

# ----------------------------- small config ---------------------------------
B, S, H = 2, 8, 32          # batch, seq_len, hidden_size
BS = B * S                  # flattened rows
H2 = H // 2                 # hidden_size // 2
NUM_HEADS, HEAD_DIM = 4, 8  # NUM_HEADS * HEAD_DIM == H
FFN = 4 * H                 # DistilBERT FFN dim
C = 3                       # num_classes
VOCAB, MAX_POS = 50, 16
LANE = 128                  # lane-padded classifier output width


# ----------------------------- shared math -----------------------------------
def _gelu(x):
    # exact (erf) GELU, matching torch.nn.GELU() default
    return 0.5 * x * (1.0 + lax.erf(x * (1.0 / math.sqrt(2.0))))


def _layer_norm(x, gamma, beta, eps):
    mu = jnp.mean(x, axis=-1, keepdims=True)
    var = jnp.mean((x - mu) ** 2, axis=-1, keepdims=True)
    return (x - mu) * lax.rsqrt(var + eps) * gamma + beta


# ------------- fused kernel: embeddings + encoder + pooling head --------------
def fused_kernel(ids_ref, mask_ref, tok_ref, pos_ref, bdiag_ref, psel_ref,
                 wqkv_ref, bqkv_ref, wo_ref, w1_ref, b1_ref, w2_ref,
                 wa1_ref, wa2_ref, wf_ref, wc1_ref, wc2_ref, bc2_ref,
                 vh_ref, vh2_ref,
                 out_ref):
    # unpack the packed bias/LN slabs (static sublane slices)
    vh = vh_ref[...]                 # [11, H]
    emb_g, emb_b = vh[0:1, :], vh[1:2, :]
    bo, ln1_g, ln1_b = vh[2:3, :], vh[3:4, :], vh[4:5, :]
    b2, ln2_g, ln2_b = vh[5:6, :], vh[6:7, :], vh[7:8, :]
    bf, lnf_g, lnf_b = vh[8:9, :], vh[9:10, :], vh[10:11, :]
    vh2 = vh2_ref[...]               # [5, H2]
    ba1, bc1 = vh2[0:1, :], vh2[1:2, :]
    lnc_g, lnc_b = vh2[2:3, :], vh2[3:4, :]
    ba2 = vh2[4:5, 0:1]              # scalar bias of the pooling score head

    # ---------------- embeddings (in-kernel one-hot gather on the MXU) --------
    ids = ids_ref[...]                                             # [BS, 1] int32
    onehot = (ids == lax.broadcasted_iota(jnp.int32, (BS, VOCAB), 1)
              ).astype(jnp.float32)                                # [BS, VOCAB]
    x = jnp.dot(onehot, tok_ref[...],
                preferred_element_type=jnp.float32) + pos_ref[...]  # [BS, H]
    x = _layer_norm(x, emb_g, emb_b, 1e-12)

    # ---------------- block-diagonal additive attention mask (built once) -----
    mask = mask_ref[...]             # [1, BS]  (1.0 = keep, 0.0 = pad)
    bdiag = bdiag_ref[...]           # [BS, BS] 1.0 inside same-batch blocks
    amask = (bdiag * mask - 1.0) * 1e9            # 0 where valid, <= -1e9 else

    # ---------------- encoder block (single DistilBERT-style layer) -----------
    qkv = jnp.dot(x, wqkv_ref[...], preferred_element_type=jnp.float32) + bqkv_ref[...]
    q, k, v = qkv[:, 0:H], qkv[:, H:2 * H], qkv[:, 2 * H:3 * H]

    scale = 1.0 / math.sqrt(HEAD_DIM)
    ctx_heads = []
    for h in range(NUM_HEADS):                    # static unrolled head loop
        cs = slice(h * HEAD_DIM, (h + 1) * HEAD_DIM)
        # q @ k^T for the whole flattened batch, cross-batch killed by amask
        s = lax.dot_general(q[:, cs], k[:, cs], (((1,), (1,)), ((), ())),
                            preferred_element_type=jnp.float32) * scale + amask
        s = s - jnp.max(s, axis=-1, keepdims=True)
        p = jnp.exp(s)
        p = p * pl.reciprocal(jnp.sum(p, axis=-1, keepdims=True), approx=True)
        ctx_heads.append(jnp.dot(p, v[:, cs], preferred_element_type=jnp.float32))
    ctx = jnp.concatenate(ctx_heads, axis=-1)     # [BS, H]  (cheap lane concat)
    attn = jnp.dot(ctx, wo_ref[...], preferred_element_type=jnp.float32) + bo

    y = _layer_norm(x + attn, ln1_g, ln1_b, 1e-12)
    h1 = _gelu(jnp.dot(y, w1_ref[...], preferred_element_type=jnp.float32) + b1_ref[...])
    ffn = jnp.dot(h1, w2_ref[...], preferred_element_type=jnp.float32) + b2
    seq = _layer_norm(y + ffn, ln2_g, ln2_b, 1e-12)        # last_hidden_state, [BS, H]

    # ---------------- attention pooling + MLP head -----------------------------
    # self.attention: Linear(H, H//2) -> Tanh -> Linear(H//2, 1)
    a = jnp.tanh(jnp.dot(seq, wa1_ref[...], preferred_element_type=jnp.float32) + ba1)
    sc = jnp.dot(a, wa2_ref[...], preferred_element_type=jnp.float32) + ba2    # [BS, 1]

    # softmax over the sequence axis (dim=1 in torch), NOT masked (matches module).
    # Fused across the batch: global-max-subtracted exp + per-batch denominators
    # via the block-diagonal matrix (any per-group constant keeps softmax exact).
    sc = sc - jnp.max(sc, axis=0, keepdims=True)
    e = jnp.exp(sc)                                                            # [BS, 1]
    denom = jnp.dot(bdiag, e, preferred_element_type=jnp.float32)              # [BS, 1]
    wgt = e * pl.reciprocal(denom, approx=True)                                # [BS, 1]
    pooled = jnp.dot(psel_ref[...], wgt * seq,
                     preferred_element_type=jnp.float32)                       # [B, H]

    # features_layers: Linear -> LayerNorm -> GELU -> Dropout(eval=id)
    feat = jnp.dot(pooled, wf_ref[...], preferred_element_type=jnp.float32) + bf
    feat = _gelu(_layer_norm(feat, lnf_g, lnf_b, 1e-5))

    # classifier: Linear -> LayerNorm -> GELU -> Dropout(eval=id) -> Linear (lane-padded)
    hm = jnp.dot(feat, wc1_ref[...], preferred_element_type=jnp.float32) + bc1
    hm = _gelu(_layer_norm(hm, lnc_g, lnc_b, 1e-5))
    out_ref[...] = jnp.dot(hm, wc2_ref[...], preferred_element_type=jnp.float32) + bc2_ref[...]


# ----------------------------- wrapper ----------------------------------------
@jax.jit
def sentimental_classifier(input_ids, attention_mask, p):
    ids2d = input_ids.reshape(BS, 1).astype(jnp.int32)                  # [BS, 1]
    mask1d = attention_mask.astype(jnp.float32).reshape(1, BS)          # [1, BS]

    logits_pad = pl.pallas_call(
        fused_kernel,
        out_shape=jax.ShapeDtypeStruct((B, LANE), jnp.float32),         # lane-dense store
    )(ids2d, mask1d, p["tok_emb"], p["pos_bs"], p["blockdiag"], p["poolsel"],
      p["wqkv"], p["bqkv"], p["wo"], p["w1"], p["b1"], p["w2"],
      p["wa1"], p["wa2"], p["wf"], p["wc1"], p["wc2p"], p["bc2p"],
      p["vecH"], p["vecH2"])
    return logits_pad[:, :C]                                            # [B, C]


# ----------------------------- parameter init ----------------------------------
def init_params(key):
    def dense(k, fan_in, fan_out):
        k1, k2 = jax.random.split(k)
        w = jax.random.normal(k1, (fan_in, fan_out), jnp.float32) * 0.02
        b = jax.random.normal(k2, (1, fan_out), jnp.float32) * 0.02
        return w, b

    ks = jax.random.split(key, 16)
    p = {}
    tok_emb = jax.random.normal(ks[0], (VOCAB, H), jnp.float32) * 0.02
    pos_emb = jax.random.normal(ks[1], (MAX_POS, H), jnp.float32) * 0.02
    emb_ln_g, emb_ln_b = jnp.ones((1, H)), jnp.zeros((1, H))

    # encoder block
    wq, bq = dense(ks[2], H, H)
    wk, bk = dense(ks[3], H, H)
    wv, bv = dense(ks[4], H, H)
    wo, bo = dense(ks[5], H, H)
    ln1_g, ln1_b = jnp.ones((1, H)), jnp.zeros((1, H))
    w1, b1 = dense(ks[6], H, FFN)
    w2, b2 = dense(ks[7], FFN, H)
    ln2_g, ln2_b = jnp.ones((1, H)), jnp.zeros((1, H))
    # attention pooling head
    wa1, ba1 = dense(ks[8], H, H2)
    wa2, ba2 = dense(ks[9], H2, 1)
    # features_layers
    wf, bf = dense(ks[10], H, H)
    lnf_g, lnf_b = jnp.ones((1, H)), jnp.zeros((1, H))
    # classifier
    wc1, bc1 = dense(ks[11], H, H2)
    lnc_g, lnc_b = jnp.ones((1, H2)), jnp.zeros((1, H2))
    wc2, bc2 = dense(ks[12], H2, C)

    # ---- packed / fused kernel parameters ----
    p["tok_emb"] = tok_emb                                       # [VOCAB, H]
    p["pos_bs"] = jnp.tile(pos_emb[:S, :], (B, 1))               # [BS, H] (static)
    # static block-diagonal structure matrices (built once at init)
    p["blockdiag"] = jnp.kron(jnp.eye(B, dtype=jnp.float32),
                              jnp.ones((S, S), jnp.float32))     # [BS, BS]
    p["poolsel"] = jnp.kron(jnp.eye(B, dtype=jnp.float32),
                            jnp.ones((1, S), jnp.float32))       # [B, BS]

    p["wqkv"] = jnp.concatenate([wq, wk, wv], axis=1)            # [H, 3H]
    p["bqkv"] = jnp.concatenate([bq, bk, bv], axis=1)            # [1, 3H]
    p["wo"], p["w1"], p["b1"], p["w2"] = wo, w1, b1, w2
    p["wa1"], p["wa2"] = wa1, wa2
    p["wf"], p["wc1"] = wf, wc1
    p["wc2p"] = jnp.zeros((H2, LANE), jnp.float32).at[:, :C].set(wc2)   # lane-padded
    p["bc2p"] = jnp.zeros((1, LANE), jnp.float32).at[:, :C].set(bc2)
    p["vecH"] = jnp.concatenate(
        [emb_ln_g, emb_ln_b, bo, ln1_g, ln1_b, b2, ln2_g, ln2_b, bf, lnf_g, lnf_b],
        axis=0)                                                  # [11, H]
    ba2_row = jnp.zeros((1, H2), jnp.float32).at[:, :1].set(ba2)
    p["vecH2"] = jnp.concatenate([ba1, bc1, lnc_g, lnc_b, ba2_row], axis=0)  # [5, H2]
    return p


# ----------------------------- main ---------------------------------------------
if __name__ == "__main__":
    key = jax.random.PRNGKey(0)
    k_param, k_ids = jax.random.split(key)
    params = init_params(k_param)

    input_ids = jax.random.randint(k_ids, (B, S), 0, VOCAB, dtype=jnp.int32)
    attention_mask = jnp.ones((B, S), dtype=jnp.int32).at[1, 6:].set(0)

    logits = sentimental_classifier(input_ids, attention_mask, params)
    jax.block_until_ready(logits)
    assert logits.shape == (B, C) and logits.dtype == jnp.float32
    print("KERNEL_OK")
</pallas_src>

<mosaic_0001>
module attributes {stable_mosaic.version = 11 : i64} {
  func.func @fused_kernel(%arg0: memref<16x1xi32, #tpu.memory_space<vmem>>, %arg1: memref<1x16xf32, #tpu.memory_space<vmem>>, %arg2: memref<50x32xf32, #tpu.memory_space<vmem>>, %arg3: memref<16x32xf32, #tpu.memory_space<vmem>>, %arg4: memref<16x16xf32, #tpu.memory_space<vmem>>, %arg5: memref<2x16xf32, #tpu.memory_space<vmem>>, %arg6: memref<32x96xf32, #tpu.memory_space<vmem>>, %arg7: memref<1x96xf32, #tpu.memory_space<vmem>>, %arg8: memref<32x32xf32, #tpu.memory_space<vmem>>, %arg9: memref<32x128xf32, #tpu.memory_space<vmem>>, %arg10: memref<1x128xf32, #tpu.memory_space<vmem>>, %arg11: memref<128x32xf32, #tpu.memory_space<vmem>>, %arg12: memref<32x16xf32, #tpu.memory_space<vmem>>, %arg13: memref<16x1xf32, #tpu.memory_space<vmem>>, %arg14: memref<32x32xf32, #tpu.memory_space<vmem>>, %arg15: memref<32x16xf32, #tpu.memory_space<vmem>>, %arg16: memref<16x128xf32, #tpu.memory_space<vmem>>, %arg17: memref<1x128xf32, #tpu.memory_space<vmem>>, %arg18: memref<11x32xf32, #tpu.memory_space<vmem>>, %arg19: memref<5x16xf32, #tpu.memory_space<vmem>>, %arg20: memref<2x128xf32, #tpu.memory_space<vmem>>) attributes {dimension_semantics = [], scalar_prefetch = 0 : i64, scratch_operands = 0 : i64, tpu.core_type = #tpu.core_type<tc>} {
    %c0 = arith.constant 0 : index
    %c0_0 = arith.constant 0 : index
    %0 = vector.load %arg18[%c0, %c0_0] : memref<11x32xf32, #tpu.memory_space<vmem>>, vector<11x32xf32>
    %1 = vector.extract_strided_slice %0 {offsets = [0, 0], sizes = [1, 32], strides = [1, 1]} : vector<11x32xf32> to vector<1x32xf32>
    %2 = vector.extract_strided_slice %0 {offsets = [1, 0], sizes = [1, 32], strides = [1, 1]} : vector<11x32xf32> to vector<1x32xf32>
    %3 = vector.extract_strided_slice %0 {offsets = [2, 0], sizes = [1, 32], strides = [1, 1]} : vector<11x32xf32> to vector<1x32xf32>
    %4 = vector.extract_strided_slice %0 {offsets = [3, 0], sizes = [1, 32], strides = [1, 1]} : vector<11x32xf32> to vector<1x32xf32>
    %5 = vector.extract_strided_slice %0 {offsets = [4, 0], sizes = [1, 32], strides = [1, 1]} : vector<11x32xf32> to vector<1x32xf32>
    %6 = vector.extract_strided_slice %0 {offsets = [5, 0], sizes = [1, 32], strides = [1, 1]} : vector<11x32xf32> to vector<1x32xf32>
    %7 = vector.extract_strided_slice %0 {offsets = [6, 0], sizes = [1, 32], strides = [1, 1]} : vector<11x32xf32> to vector<1x32xf32>
    %8 = vector.extract_strided_slice %0 {offsets = [7, 0], sizes = [1, 32], strides = [1, 1]} : vector<11x32xf32> to vector<1x32xf32>
    %9 = vector.extract_strided_slice %0 {offsets = [8, 0], sizes = [1, 32], strides = [1, 1]} : vector<11x32xf32> to vector<1x32xf32>
    %10 = vector.extract_strided_slice %0 {offsets = [9, 0], sizes = [1, 32], strides = [1, 1]} : vector<11x32xf32> to vector<1x32xf32>
    %11 = vector.extract_strided_slice %0 {offsets = [10, 0], sizes = [1, 32], strides = [1, 1]} : vector<11x32xf32> to vector<1x32xf32>
    %c0_1 = arith.constant 0 : index
    %c0_2 = arith.constant 0 : index
    %12 = vector.load %arg19[%c0_1, %c0_2] : memref<5x16xf32, #tpu.memory_space<vmem>>, vector<5x16xf32>
    %13 = vector.extract_strided_slice %12 {offsets = [0, 0], sizes = [1, 16], strides = [1, 1]} : vector<5x16xf32> to vector<1x16xf32>
    %14 = vector.extract_strided_slice %12 {offsets = [1, 0], sizes = [1, 16], strides = [1, 1]} : vector<5x16xf32> to vector<1x16xf32>
    %15 = vector.extract_strided_slice %12 {offsets = [2, 0], sizes = [1, 16], strides = [1, 1]} : vector<5x16xf32> to vector<1x16xf32>
    %16 = vector.extract_strided_slice %12 {offsets = [3, 0], sizes = [1, 16], strides = [1, 1]} : vector<5x16xf32> to vector<1x16xf32>
    %17 = vector.extract_strided_slice %12 {offsets = [4, 0], sizes = [1, 1], strides = [1, 1]} : vector<5x16xf32> to vector<1x1xf32>
    %c0_3 = arith.constant 0 : index
    %c0_4 = arith.constant 0 : index
    %18 = vector.load %arg0[%c0_3, %c0_4] : memref<16x1xi32, #tpu.memory_space<vmem>>, vector<16x1xi32>
    %19 = tpu.iota {dimensions = array<i32: 1>} : vector<16x50xi32>
    %20 = vector.broadcast %18 : vector<16x1xi32> to vector<16x50xi32>
    %21 = arith.cmpi eq, %20, %19 : vector<16x50xi32>
    %22 = arith.extui %21 : vector<16x50xi1> to vector<16x50xi32>
    %23 = arith.sitofp %22 : vector<16x50xi32> to vector<16x50xf32>
    %c0_5 = arith.constant 0 : index
    %c0_6 = arith.constant 0 : index
    %24 = vector.load %arg2[%c0_5, %c0_6] : memref<50x32xf32, #tpu.memory_space<vmem>>, vector<50x32xf32>
    %cst = arith.constant dense<0.000000e+00> : vector<16x32xf32>
    %25 = tpu.matmul %23, %24, %cst {dimension_numbers = #tpu.dot_dimension_numbers<[1], [0], [0], [1], [0, 0, 1, 1], [], []>} : vector<16x50xf32>, vector<50x32xf32>, vector<16x32xf32> -> vector<16x32xf32>
    %c0_7 = arith.constant 0 : index
    %c0_8 = arith.constant 0 : index
    %26 = vector.load %arg3[%c0_7, %c0_8] : memref<16x32xf32, #tpu.memory_space<vmem>>, vector<16x32xf32>
    %27 = arith.addf %25, %26 : vector<16x32xf32>
    %cst_9 = arith.constant dense<0.000000e+00> : vector<16xf32>
    %28 = vector.multi_reduction <add>, %27, %cst_9 [1] : vector<16x32xf32> to vector<16xf32>
    %29 = vector.shape_cast %28 : vector<16xf32> to vector<16x1xf32>
    %cst_10 = arith.constant 3.200000e+01 : f32
    %30 = vector.broadcast %cst_10 : f32 to vector<16x1xf32>
    %31 = arith.divf %29, %30 : vector<16x1xf32>
    %32 = vector.broadcast %31 : vector<16x1xf32> to vector<16x32xf32>
    %33 = arith.subf %27, %32 : vector<16x32xf32>
    %34 = arith.mulf %33, %33 : vector<16x32xf32>
    %cst_11 = arith.constant dense<0.000000e+00> : vector<16xf32>
    %35 = vector.multi_reduction <add>, %34, %cst_11 [1] : vector<16x32xf32> to vector<16xf32>
    %36 = vector.shape_cast %35 : vector<16xf32> to vector<16x1xf32>
    %cst_12 = arith.constant 3.200000e+01 : f32
    %37 = vector.broadcast %cst_12 : f32 to vector<16x1xf32>
    %38 = arith.divf %36, %37 : vector<16x1xf32>
    %39 = vector.broadcast %31 : vector<16x1xf32> to vector<16x32xf32>
    %40 = arith.subf %27, %39 : vector<16x32xf32>
    %cst_13 = arith.constant 9.99999996E-13 : f32
    %41 = vector.broadcast %cst_13 : f32 to vector<16x1xf32>
    %42 = arith.addf %38, %41 : vector<16x1xf32>
    %43 = math.rsqrt %42 : vector<16x1xf32>
    %44 = vector.broadcast %43 : vector<16x1xf32> to vector<16x32xf32>
    %45 = arith.mulf %40, %44 : vector<16x32xf32>
    %46 = vector.broadcast %1 : vector<1x32xf32> to vector<16x32xf32>
    %47 = arith.mulf %45, %46 : vector<16x32xf32>
    %48 = vector.broadcast %2 : vector<1x32xf32> to vector<16x32xf32>
    %49 = arith.addf %47, %48 : vector<16x32xf32>
    %c0_14 = arith.constant 0 : index
    %c0_15 = arith.constant 0 : index
    %50 = vector.load %arg1[%c0_14, %c0_15] : memref<1x16xf32, #tpu.memory_space<vmem>>, vector<1x16xf32>
    %c0_16 = arith.constant 0 : index
    %c0_17 = arith.constant 0 : index
    %51 = vector.load %arg4[%c0_16, %c0_17] : memref<16x16xf32, #tpu.memory_space<vmem>>, vector<16x16xf32>
    %52 = vector.broadcast %50 : vector<1x16xf32> to vector<16x16xf32>
    %53 = arith.mulf %51, %52 : vector<16x16xf32>
    %cst_18 = arith.constant 1.000000e+00 : f32
    %54 = vector.broadcast %cst_18 : f32 to vector<16x16xf32>
    %55 = arith.subf %53, %54 : vector<16x16xf32>
    %cst_19 = arith.constant 1.000000e+09 : f32
    %56 = vector.broadcast %cst_19 : f32 to vector<16x16xf32>
    %57 = arith.mulf %55, %56 : vector<16x16xf32>
    %c0_20 = arith.constant 0 : index
    %c0_21 = arith.constant 0 : index
    %58 = vector.load %arg6[%c0_20, %c0_21] : memref<32x96xf32, #tpu.memory_space<vmem>>, vector<32x96xf32>
    %cst_22 = arith.constant dense<0.000000e+00> : vector<16x96xf32>
    %59 = tpu.matmul %49, %58, %cst_22 {dimension_numbers = #tpu.dot_dimension_numbers<[1], [0], [0], [1], [0, 0, 1, 1], [], []>} : vector<16x32xf32>, vector<32x96xf32>, vector<16x96xf32> -> vector<16x96xf32>
    %c0_23 = arith.constant 0 : index
    %c0_24 = arith.constant 0 : index
    %60 = vector.load %arg7[%c0_23, %c0_24] : memref<1x96xf32, #tpu.memory_space<vmem>>, vector<1x96xf32>
    %61 = vector.broadcast %60 : vector<1x96xf32> to vector<16x96xf32>
    %62 = arith.addf %59, %61 : vector<16x96xf32>
    %63 = vector.extract_strided_slice %62 {offsets = [0, 0], sizes = [16, 32], strides = [1, 1]} : vector<16x96xf32> to vector<16x32xf32>
    %64 = vector.extract_strided_slice %62 {offsets = [0, 32], sizes = [16, 32], strides = [1, 1]} : vector<16x96xf32> to vector<16x32xf32>
    %65 = vector.extract_strided_slice %62 {offsets = [0, 64], sizes = [16, 32], strides = [1, 1]} : vector<16x96xf32> to vector<16x32xf32>
    %66 = vector.extract_strided_slice %63 {offsets = [0, 0], sizes = [16, 8], strides = [1, 1]} : vector<16x32xf32> to vector<16x8xf32>
    %67 = vector.extract_strided_slice %64 {offsets = [0, 0], sizes = [16, 8], strides = [1, 1]} : vector<16x32xf32> to vector<16x8xf32>
    %cst_25 = arith.constant dense<0.000000e+00> : vector<16x16xf32>
    %68 = tpu.matmul %66, %67, %cst_25 {dimension_numbers = #tpu.dot_dimension_numbers<[1], [1], [0], [0], [0, 0, 1, 0], [], []>} : vector<16x8xf32>, vector<16x8xf32>, vector<16x16xf32> -> vector<16x16xf32>
    %cst_26 = arith.constant 0.353553385 : f32
    %69 = vector.broadcast %cst_26 : f32 to vector<16x16xf32>
    %70 = arith.mulf %68, %69 : vector<16x16xf32>
    %71 = arith.addf %70, %57 : vector<16x16xf32>
    %cst_27 = arith.constant dense<0xFF800000> : vector<16xf32>
    %72 = vector.multi_reduction <maximumf>, %71, %cst_27 [1] : vector<16x16xf32> to vector<16xf32>
    %73 = vector.shape_cast %72 : vector<16xf32> to vector<16x1xf32>
    %74 = vector.broadcast %73 : vector<16x1xf32> to vector<16x16xf32>
    %75 = arith.subf %71, %74 : vector<16x16xf32>
    %76 = math.exp %75 : vector<16x16xf32>
    %cst_28 = arith.constant dense<0.000000e+00> : vector<16xf32>
    %77 = vector.multi_reduction <add>, %76, %cst_28 [1] : vector<16x16xf32> to vector<16xf32>
    %78 = vector.shape_cast %77 : vector<16xf32> to vector<16x1xf32>
    %79 = tpu.reciprocal %78 {approx = true} : vector<16x1xf32> -> vector<16x1xf32>
    %80 = vector.broadcast %79 : vector<16x1xf32> to vector<16x16xf32>
    %81 = arith.mulf %76, %80 : vector<16x16xf32>
    %82 = vector.extract_strided_slice %65 {offsets = [0, 0], sizes = [16, 8], strides = [1, 1]} : vector<16x32xf32> to vector<16x8xf32>
    %cst_29 = arith.constant dense<0.000000e+00> : vector<16x8xf32>
    %83 = tpu.matmul %81, %82, %cst_29 {dimension_numbers = #tpu.dot_dimension_numbers<[1], [0], [0], [1], [0, 0, 1, 1], [], []>} : vector<16x16xf32>, vector<16x8xf32>, vector<16x8xf32> -> vector<16x8xf32>
    %84 = vector.extract_strided_slice %63 {offsets = [0, 8], sizes = [16, 8], strides = [1, 1]} : vector<16x32xf32> to vector<16x8xf32>
    %85 = vector.extract_strided_slice %64 {offsets = [0, 8], sizes = [16, 8], strides = [1, 1]} : vector<16x32xf32> to vector<16x8xf32>
    %cst_30 = arith.constant dense<0.000000e+00> : vector<16x16xf32>
    %86 = tpu.matmul %84, %85, %cst_30 {dimension_numbers = #tpu.dot_dimension_numbers<[1], [1], [0], [0], [0, 0, 1, 0], [], []>} : vector<16x8xf32>, vector<16x8xf32>, vector<16x16xf32> -> vector<16x16xf32>
    %cst_31 = arith.constant 0.353553385 : f32
    %87 = vector.broadcast %cst_31 : f32 to vector<16x16xf32>
    %88 = arith.mulf %86, %87 : vector<16x16xf32>
    %89 = arith.addf %88, %57 : vector<16x16xf32>
    %cst_32 = arith.constant dense<0xFF800000> : vector<16xf32>
    %90 = vector.multi_reduction <maximumf>, %89, %cst_32 [1] : vector<16x16xf32> to vector<16xf32>
    %91 = vector.shape_cast %90 : vector<16xf32> to vector<16x1xf32>
    %92 = vector.broadcast %91 : vector<16x1xf32> to vector<16x16xf32>
    %93 = arith.subf %89, %92 : vector<16x16xf32>
    %94 = math.exp %93 : vector<16x16xf32>
    %cst_33 = arith.constant dense<0.000000e+00> : vector<16xf32>
    %95 = vector.multi_reduction <add>, %94, %cst_33 [1] : vector<16x16xf32> to vector<16xf32>
    %96 = vector.shape_cast %95 : vector<16xf32> to vector<16x1xf32>
    %97 = tpu.reciprocal %96 {approx = true} : vector<16x1xf32> -> vector<16x1xf32>
    %98 = vector.broadcast %97 : vector<16x1xf32> to vector<16x16xf32>
    %99 = arith.mulf %94, %98 : vector<16x16xf32>
    %100 = vector.extract_strided_slice %65 {offsets = [0, 8], sizes = [16, 8], strides = [1, 1]} : vector<16x32xf32> to vector<16x8xf32>
    %cst_34 = arith.constant dense<0.000000e+00> : vector<16x8xf32>
    %101 = tpu.matmul %99, %100, %cst_34 {dimension_numbers = #tpu.dot_dimension_numbers<[1], [0], [0], [1], [0, 0, 1, 1], [], []>} : vector<16x16xf32>, vector<16x8xf32>, vector<16x8xf32> -> vector<16x8xf32>
    %102 = vector.extract_strided_slice %63 {offsets = [0, 16], sizes = [16, 8], strides = [1, 1]} : vector<16x32xf32> to vector<16x8xf32>
    %103 = vector.extract_strided_slice %64 {offsets = [0, 16], sizes = [16, 8], strides = [1, 1]} : vector<16x32xf32> to vector<16x8xf32>
    %cst_35 = arith.constant dense<0.000000e+00> : vector<16x16xf32>
    %104 = tpu.matmul %102, %103, %cst_35 {dimension_numbers = #tpu.dot_dimension_numbers<[1], [1], [0], [0], [0, 0, 1, 0], [], []>} : vector<16x8xf32>, vector<16x8xf32>, vector<16x16xf32> -> vector<16x16xf32>
    %cst_36 = arith.constant 0.353553385 : f32
    %105 = vector.broadcast %cst_36 : f32 to vector<16x16xf32>
    %106 = arith.mulf %104, %105 : vector<16x16xf32>
    %107 = arith.addf %106, %57 : vector<16x16xf32>
    %cst_37 = arith.constant dense<0xFF800000> : vector<16xf32>
    %108 = vector.multi_reduction <maximumf>, %107, %cst_37 [1] : vector<16x16xf32> to vector<16xf32>
    %109 = vector.shape_cast %108 : vector<16xf32> to vector<16x1xf32>
    %110 = vector.broadcast %109 : vector<16x1xf32> to vector<16x16xf32>
    %111 = arith.subf %107, %110 : vector<16x16xf32>
    %112 = math.exp %111 : vector<16x16xf32>
    %cst_38 = arith.constant dense<0.000000e+00> : vector<16xf32>
    %113 = vector.multi_reduction <add>, %112, %cst_38 [1] : vector<16x16xf32> to vector<16xf32>
    %114 = vector.shape_cast %113 : vector<16xf32> to vector<16x1xf32>
    %115 = tpu.reciprocal %114 {approx = true} : vector<16x1xf32> -> vector<16x1xf32>
    %116 = vector.broadcast %115 : vector<16x1xf32> to vector<16x16xf32>
    %117 = arith.mulf %112, %116 : vector<16x16xf32>
    %118 = vector.extract_strided_slice %65 {offsets = [0, 16], sizes = [16, 8], strides = [1, 1]} : vector<16x32xf32> to vector<16x8xf32>
    %cst_39 = arith.constant dense<0.000000e+00> : vector<16x8xf32>
    %119 = tpu.matmul %117, %118, %cst_39 {dimension_numbers = #tpu.dot_dimension_numbers<[1], [0], [0], [1], [0, 0, 1, 1], [], []>} : vector<16x16xf32>, vector<16x8xf32>, vector<16x8xf32> -> vector<16x8xf32>
    %120 = vector.extract_strided_slice %63 {offsets = [0, 24], sizes = [16, 8], strides = [1, 1]} : vector<16x32xf32> to vector<16x8xf32>
    %121 = vector.extract_strided_slice %64 {offsets = [0, 24], sizes = [16, 8], strides = [1, 1]} : vector<16x32xf32> to vector<16x8xf32>
    %cst_40 = arith.constant dense<0.000000e+00> : vector<16x16xf32>
    %122 = tpu.matmul %120, %121, %cst_40 {dimension_numbers = #tpu.dot_dimension_numbers<[1], [1], [0], [0], [0, 0, 1, 0], [], []>} : vector<16x8xf32>, vector<16x8xf32>, vector<16x16xf32> -> vector<16x16xf32>
    %cst_41 = arith.constant 0.353553385 : f32
    %123 = vector.broadcast %cst_41 : f32 to vector<16x16xf32>
    %124 = arith.mulf %122, %123 : vector<16x16xf32>
    %125 = arith.addf %124, %57 : vector<16x16xf32>
    %cst_42 = arith.constant dense<0xFF800000> : vector<16xf32>
    %126 = vector.multi_reduction <maximumf>, %125, %cst_42 [1] : vector<16x16xf32> to vector<16xf32>
    %127 = vector.shape_cast %126 : vector<16xf32> to vector<16x1xf32>
    %128 = vector.broadcast %127 : vector<16x1xf32> to vector<16x16xf32>
    %129 = arith.subf %125, %128 : vector<16x16xf32>
    %130 = math.exp %129 : vector<16x16xf32>
    %cst_43 = arith.constant dense<0.000000e+00> : vector<16xf32>
    %131 = vector.multi_reduction <add>, %130, %cst_43 [1] : vector<16x16xf32> to vector<16xf32>
    %132 = vector.shape_cast %131 : vector<16xf32> to vector<16x1xf32>
    %133 = tpu.reciprocal %132 {approx = true} : vector<16x1xf32> -> vector<16x1xf32>
    %134 = vector.broadcast %133 : vector<16x1xf32> to vector<16x16xf32>
    %135 = arith.mulf %130, %134 : vector<16x16xf32>
    %136 = vector.extract_strided_slice %65 {offsets = [0, 24], sizes = [16, 8], strides = [1, 1]} : vector<16x32xf32> to vector<16x8xf32>
    %cst_44 = arith.constant dense<0.000000e+00> : vector<16x8xf32>
    %137 = tpu.matmul %135, %136, %cst_44 {dimension_numbers = #tpu.dot_dimension_numbers<[1], [0], [0], [1], [0, 0, 1, 1], [], []>} : vector<16x16xf32>, vector<16x8xf32>, vector<16x8xf32> -> vector<16x8xf32>
    %138 = tpu.concatenate %83, %101, %119, %137 in 1 : vector<16x8xf32>, vector<16x8xf32>, vector<16x8xf32>, vector<16x8xf32> -> vector<16x32xf32>
    %c0_45 = arith.constant 0 : index
    %c0_46 = arith.constant 0 : index
    %139 = vector.load %arg8[%c0_45, %c0_46] : memref<32x32xf32, #tpu.memory_space<vmem>>, vector<32x32xf32>
    %cst_47 = arith.constant dense<0.000000e+00> : vector<16x32xf32>
    %140 = tpu.matmul %138, %139, %cst_47 {dimension_numbers = #tpu.dot_dimension_numbers<[1], [0], [0], [1], [0, 0, 1, 1], [], []>} : vector<16x32xf32>, vector<32x32xf32>, vector<16x32xf32> -> vector<16x32xf32>
    %141 = vector.broadcast %3 : vector<1x32xf32> to vector<16x32xf32>
    %142 = arith.addf %140, %141 : vector<16x32xf32>
    %143 = arith.addf %49, %142 : vector<16x32xf32>
    %cst_48 = arith.constant dense<0.000000e+00> : vector<16xf32>
    %144 = vector.multi_reduction <add>, %143, %cst_48 [1] : vector<16x32xf32> to vector<16xf32>
    %145 = vector.shape_cast %144 : vector<16xf32> to vector<16x1xf32>
    %cst_49 = arith.constant 3.200000e+01 : f32
    %146 = vector.broadcast %cst_49 : f32 to vector<16x1xf32>
    %147 = arith.divf %145, %146 : vector<16x1xf32>
    %148 = vector.broadcast %147 : vector<16x1xf32> to vector<16x32xf32>
    %149 = arith.subf %143, %148 : vector<16x32xf32>
    %150 = arith.mulf %149, %149 : vector<16x32xf32>
    %cst_50 = arith.constant dense<0.000000e+00> : vector<16xf32>
    %151 = vector.multi_reduction <add>, %150, %cst_50 [1] : vector<16x32xf32> to vector<16xf32>
    %152 = vector.shape_cast %151 : vector<16xf32> to vector<16x1xf32>
    %cst_51 = arith.constant 3.200000e+01 : f32
    %153 = vector.broadcast %cst_51 : f32 to vector<16x1xf32>
    %154 = arith.divf %152, %153 : vector<16x1xf32>
    %155 = vector.broadcast %147 : vector<16x1xf32> to vector<16x32xf32>
    %156 = arith.subf %143, %155 : vector<16x32xf32>
    %cst_52 = arith.constant 9.99999996E-13 : f32
    %157 = vector.broadcast %cst_52 : f32 to vector<16x1xf32>
    %158 = arith.addf %154, %157 : vector<16x1xf32>
    %159 = math.rsqrt %158 : vector<16x1xf32>
    %160 = vector.broadcast %159 : vector<16x1xf32> to vector<16x32xf32>
    %161 = arith.mulf %156, %160 : vector<16x32xf32>
    %162 = vector.broadcast %4 : vector<1x32xf32> to vector<16x32xf32>
    %163 = arith.mulf %161, %162 : vector<16x32xf32>
    %164 = vector.broadcast %5 : vector<1x32xf32> to vector<16x32xf32>
    %165 = arith.addf %163, %164 : vector<16x32xf32>
    %c0_53 = arith.constant 0 : index
    %c0_54 = arith.constant 0 : index
    %166 = vector.load %arg9[%c0_53, %c0_54] : memref<32x128xf32, #tpu.memory_space<vmem>>, vector<32x128xf32>
    %cst_55 = arith.constant dense<0.000000e+00> : vector<16x128xf32>
    %167 = tpu.matmul %165, %166, %cst_55 {dimension_numbers = #tpu.dot_dimension_numbers<[1], [0], [0], [1], [0, 0, 1, 1], [], []>} : vector<16x32xf32>, vector<32x128xf32>, vector<16x128xf32> -> vector<16x128xf32>
    %c0_56 = arith.constant 0 : index
    %c0_57 = arith.constant 0 : index
    %168 = vector.load %arg10[%c0_56, %c0_57] : memref<1x128xf32, #tpu.memory_space<vmem>>, vector<1x128xf32>
    %169 = vector.broadcast %168 : vector<1x128xf32> to vector<16x128xf32>
    %170 = arith.addf %167, %169 : vector<16x128xf32>
    %cst_58 = arith.constant 5.000000e-01 : f32
    %171 = vector.broadcast %cst_58 : f32 to vector<16x128xf32>
    %172 = arith.mulf %171, %170 : vector<16x128xf32>
    %cst_59 = arith.constant 0.707106769 : f32
    %173 = vector.broadcast %cst_59 : f32 to vector<16x128xf32>
    %174 = arith.mulf %170, %173 : vector<16x128xf32>
    %175 = math.erf %174 : vector<16x128xf32>
    %cst_60 = arith.constant 1.000000e+00 : f32
    %176 = vector.broadcast %cst_60 : f32 to vector<16x128xf32>
    %177 = arith.addf %176, %175 : vector<16x128xf32>
    %178 = arith.mulf %172, %177 : vector<16x128xf32>
    %c0_61 = arith.constant 0 : index
    %c0_62 = arith.constant 0 : index
    %179 = vector.load %arg11[%c0_61, %c0_62] : memref<128x32xf32, #tpu.memory_space<vmem>>, vector<128x32xf32>
    %cst_63 = arith.constant dense<0.000000e+00> : vector<16x32xf32>
    %180 = tpu.matmul %178, %179, %cst_63 {dimension_numbers = #tpu.dot_dimension_numbers<[1], [0], [0], [1], [0, 0, 1, 1], [], []>} : vector<16x128xf32>, vector<128x32xf32>, vector<16x32xf32> -> vector<16x32xf32>
    %181 = vector.broadcast %6 : vector<1x32xf32> to vector<16x32xf32>
    %182 = arith.addf %180, %181 : vector<16x32xf32>
    %183 = arith.addf %165, %182 : vector<16x32xf32>
    %cst_64 = arith.constant dense<0.000000e+00> : vector<16xf32>
    %184 = vector.multi_reduction <add>, %183, %cst_64 [1] : vector<16x32xf32> to vector<16xf32>
    %185 = vector.shape_cast %184 : vector<16xf32> to vector<16x1xf32>
    %cst_65 = arith.constant 3.200000e+01 : f32
    %186 = vector.broadcast %cst_65 : f32 to vector<16x1xf32>
    %187 = arith.divf %185, %186 : vector<16x1xf32>
    %188 = vector.broadcast %187 : vector<16x1xf32> to vector<16x32xf32>
    %189 = arith.subf %183, %188 : vector<16x32xf32>
    %190 = arith.mulf %189, %189 : vector<16x32xf32>
    %cst_66 = arith.constant dense<0.000000e+00> : vector<16xf32>
    %191 = vector.multi_reduction <add>, %190, %cst_66 [1] : vector<16x32xf32> to vector<16xf32>
    %192 = vector.shape_cast %191 : vector<16xf32> to vector<16x1xf32>
    %cst_67 = arith.constant 3.200000e+01 : f32
    %193 = vector.broadcast %cst_67 : f32 to vector<16x1xf32>
    %194 = arith.divf %192, %193 : vector<16x1xf32>
    %195 = vector.broadcast %187 : vector<16x1xf32> to vector<16x32xf32>
    %196 = arith.subf %183, %195 : vector<16x32xf32>
    %cst_68 = arith.constant 9.99999996E-13 : f32
    %197 = vector.broadcast %cst_68 : f32 to vector<16x1xf32>
    %198 = arith.addf %194, %197 : vector<16x1xf32>
    %199 = math.rsqrt %198 : vector<16x1xf32>
    %200 = vector.broadcast %199 : vector<16x1xf32> to vector<16x32xf32>
    %201 = arith.mulf %196, %200 : vector<16x32xf32>
    %202 = vector.broadcast %7 : vector<1x32xf32> to vector<16x32xf32>
    %203 = arith.mulf %201, %202 : vector<16x32xf32>
    %204 = vector.broadcast %8 : vector<1x32xf32> to vector<16x32xf32>
    %205 = arith.addf %203, %204 : vector<16x32xf32>
    %c0_69 = arith.constant 0 : index
    %c0_70 = arith.constant 0 : index
    %206 = vector.load %arg12[%c0_69, %c0_70] : memref<32x16xf32, #tpu.memory_space<vmem>>, vector<32x16xf32>
    %cst_71 = arith.constant dense<0.000000e+00> : vector<16x16xf32>
    %207 = tpu.matmul %205, %206, %cst_71 {dimension_numbers = #tpu.dot_dimension_numbers<[1], [0], [0], [1], [0, 0, 1, 1], [], []>} : vector<16x32xf32>, vector<32x16xf32>, vector<16x16xf32> -> vector<16x16xf32>
    %208 = vector.broadcast %13 : vector<1x16xf32> to vector<16x16xf32>
    %209 = arith.addf %207, %208 : vector<16x16xf32>
    %210 = math.tanh %209 : vector<16x16xf32>
    %c0_72 = arith.constant 0 : index
    %c0_73 = arith.constant 0 : index
    %211 = vector.load %arg13[%c0_72, %c0_73] : memref<16x1xf32, #tpu.memory_space<vmem>>, vector<16x1xf32>
    %cst_74 = arith.constant dense<0.000000e+00> : vector<16x1xf32>
    %212 = tpu.matmul %210, %211, %cst_74 {dimension_numbers = #tpu.dot_dimension_numbers<[1], [0], [0], [1], [0, 0, 1, 1], [], []>} : vector<16x16xf32>, vector<16x1xf32>, vector<16x1xf32> -> vector<16x1xf32>
    %213 = vector.broadcast %17 : vector<1x1xf32> to vector<16x1xf32>
    %214 = arith.addf %212, %213 : vector<16x1xf32>
    %cst_75 = arith.constant dense<0xFF800000> : vector<1xf32>
    %215 = vector.multi_reduction <maximumf>, %214, %cst_75 [0] : vector<16x1xf32> to vector<1xf32>
    %216 = vector.shape_cast %215 : vector<1xf32> to vector<1x1xf32>
    %217 = vector.broadcast %216 : vector<1x1xf32> to vector<16x1xf32>
    %218 = arith.subf %214, %217 : vector<16x1xf32>
    %219 = math.exp %218 : vector<16x1xf32>
    %cst_76 = arith.constant dense<0.000000e+00> : vector<16x1xf32>
    %220 = tpu.matmul %51, %219, %cst_76 {dimension_numbers = #tpu.dot_dimension_numbers<[1], [0], [0], [1], [0, 0, 1, 1], [], []>} : vector<16x16xf32>, vector<16x1xf32>, vector<16x1xf32> -> vector<16x1xf32>
    %221 = tpu.reciprocal %220 {approx = true} : vector<16x1xf32> -> vector<16x1xf32>
    %222 = arith.mulf %219, %221 : vector<16x1xf32>
    %c0_77 = arith.constant 0 : index
    %c0_78 = arith.constant 0 : index
    %223 = vector.load %arg5[%c0_77, %c0_78] : memref<2x16xf32, #tpu.memory_space<vmem>>, vector<2x16xf32>
    %224 = vector.broadcast %222 : vector<16x1xf32> to vector<16x32xf32>
    %225 = arith.mulf %224, %205 : vector<16x32xf32>
    %cst_79 = arith.constant dense<0.000000e+00> : vector<2x32xf32>
    %226 = tpu.matmul %223, %225, %cst_79 {dimension_numbers = #tpu.dot_dimension_numbers<[1], [0], [0], [1], [0, 0, 1, 1], [], []>} : vector<2x16xf32>, vector<16x32xf32>, vector<2x32xf32> -> vector<2x32xf32>
    %c0_80 = arith.constant 0 : index
    %c0_81 = arith.constant 0 : index
    %227 = vector.load %arg14[%c0_80, %c0_81] : memref<32x32xf32, #tpu.memory_space<vmem>>, vector<32x32xf32>
    %cst_82 = arith.constant dense<0.000000e+00> : vector<2x32xf32>
    %228 = tpu.matmul %226, %227, %cst_82 {dimension_numbers = #tpu.dot_dimension_numbers<[1], [0], [0], [1], [0, 0, 1, 1], [], []>} : vector<2x32xf32>, vector<32x32xf32>, vector<2x32xf32> -> vector<2x32xf32>
    %229 = vector.broadcast %9 : vector<1x32xf32> to vector<2x32xf32>
    %230 = arith.addf %228, %229 : vector<2x32xf32>
    %cst_83 = arith.constant dense<0.000000e+00> : vector<2xf32>
    %231 = vector.multi_reduction <add>, %230, %cst_83 [1] : vector<2x32xf32> to vector<2xf32>
    %232 = vector.shape_cast %231 : vector<2xf32> to vector<2x1xf32>
    %cst_84 = arith.constant 3.200000e+01 : f32
    %233 = vector.broadcast %cst_84 : f32 to vector<2x1xf32>
    %234 = arith.divf %232, %233 : vector<2x1xf32>
    %235 = vector.broadcast %234 : vector<2x1xf32> to vector<2x32xf32>
    %236 = arith.subf %230, %235 : vector<2x32xf32>
    %237 = arith.mulf %236, %236 : vector<2x32xf32>
    %cst_85 = arith.constant dense<0.000000e+00> : vector<2xf32>
    %238 = vector.multi_reduction <add>, %237, %cst_85 [1] : vector<2x32xf32> to vector<2xf32>
    %239 = vector.shape_cast %238 : vector<2xf32> to vector<2x1xf32>
    %cst_86 = arith.constant 3.200000e+01 : f32
    %240 = vector.broadcast %cst_86 : f32 to vector<2x1xf32>
    %241 = arith.divf %239, %240 : vector<2x1xf32>
    %242 = vector.broadcast %234 : vector<2x1xf32> to vector<2x32xf32>
    %243 = arith.subf %230, %242 : vector<2x32xf32>
    %cst_87 = arith.constant 9.99999974E-6 : f32
    %244 = vector.broadcast %cst_87 : f32 to vector<2x1xf32>
    %245 = arith.addf %241, %244 : vector<2x1xf32>
    %246 = math.rsqrt %245 : vector<2x1xf32>
    %247 = vector.broadcast %246 : vector<2x1xf32> to vector<2x32xf32>
    %248 = arith.mulf %243, %247 : vector<2x32xf32>
    %249 = vector.broadcast %10 : vector<1x32xf32> to vector<2x32xf32>
    %250 = arith.mulf %248, %249 : vector<2x32xf32>
    %251 = vector.broadcast %11 : vector<1x32xf32> to vector<2x32xf32>
    %252 = arith.addf %250, %251 : vector<2x32xf32>
    %cst_88 = arith.constant 5.000000e-01 : f32
    %253 = vector.broadcast %cst_88 : f32 to vector<2x32xf32>
    %254 = arith.mulf %253, %252 : vector<2x32xf32>
    %cst_89 = arith.constant 0.707106769 : f32
    %255 = vector.broadcast %cst_89 : f32 to vector<2x32xf32>
    %256 = arith.mulf %252, %255 : vector<2x32xf32>
    %257 = math.erf %256 : vector<2x32xf32>
    %cst_90 = arith.constant 1.000000e+00 : f32
    %258 = vector.broadcast %cst_90 : f32 to vector<2x32xf32>
    %259 = arith.addf %258, %257 : vector<2x32xf32>
    %260 = arith.mulf %254, %259 : vector<2x32xf32>
    %c0_91 = arith.constant 0 : index
    %c0_92 = arith.constant 0 : index
    %261 = vector.load %arg15[%c0_91, %c0_92] : memref<32x16xf32, #tpu.memory_space<vmem>>, vector<32x16xf32>
    %cst_93 = arith.constant dense<0.000000e+00> : vector<2x16xf32>
    %262 = tpu.matmul %260, %261, %cst_93 {dimension_numbers = #tpu.dot_dimension_numbers<[1], [0], [0], [1], [0, 0, 1, 1], [], []>} : vector<2x32xf32>, vector<32x16xf32>, vector<2x16xf32> -> vector<2x16xf32>
    %263 = vector.broadcast %14 : vector<1x16xf32> to vector<2x16xf32>
    %264 = arith.addf %262, %263 : vector<2x16xf32>
    %cst_94 = arith.constant dense<0.000000e+00> : vector<2xf32>
    %265 = vector.multi_reduction <add>, %264, %cst_94 [1] : vector<2x16xf32> to vector<2xf32>
    %266 = vector.shape_cast %265 : vector<2xf32> to vector<2x1xf32>
    %cst_95 = arith.constant 1.600000e+01 : f32
    %267 = vector.broadcast %cst_95 : f32 to vector<2x1xf32>
    %268 = arith.divf %266, %267 : vector<2x1xf32>
    %269 = vector.broadcast %268 : vector<2x1xf32> to vector<2x16xf32>
    %270 = arith.subf %264, %269 : vector<2x16xf32>
    %271 = arith.mulf %270, %270 : vector<2x16xf32>
    %cst_96 = arith.constant dense<0.000000e+00> : vector<2xf32>
    %272 = vector.multi_reduction <add>, %271, %cst_96 [1] : vector<2x16xf32> to vector<2xf32>
    %273 = vector.shape_cast %272 : vector<2xf32> to vector<2x1xf32>
    %cst_97 = arith.constant 1.600000e+01 : f32
    %274 = vector.broadcast %cst_97 : f32 to vector<2x1xf32>
    %275 = arith.divf %273, %274 : vector<2x1xf32>
    %276 = vector.broadcast %268 : vector<2x1xf32> to vector<2x16xf32>
    %277 = arith.subf %264, %276 : vector<2x16xf32>
    %cst_98 = arith.constant 9.99999974E-6 : f32
    %278 = vector.broadcast %cst_98 : f32 to vector<2x1xf32>
    %279 = arith.addf %275, %278 : vector<2x1xf32>
    %280 = math.rsqrt %279 : vector<2x1xf32>
    %281 = vector.broadcast %280 : vector<2x1xf32> to vector<2x16xf32>
    %282 = arith.mulf %277, %281 : vector<2x16xf32>
    %283 = vector.broadcast %15 : vector<1x16xf32> to vector<2x16xf32>
    %284 = arith.mulf %282, %283 : vector<2x16xf32>
    %285 = vector.broadcast %16 : vector<1x16xf32> to vector<2x16xf32>
    %286 = arith.addf %284, %285 : vector<2x16xf32>
    %cst_99 = arith.constant 5.000000e-01 : f32
    %287 = vector.broadcast %cst_99 : f32 to vector<2x16xf32>
    %288 = arith.mulf %287, %286 : vector<2x16xf32>
    %cst_100 = arith.constant 0.707106769 : f32
    %289 = vector.broadcast %cst_100 : f32 to vector<2x16xf32>
    %290 = arith.mulf %286, %289 : vector<2x16xf32>
    %291 = math.erf %290 : vector<2x16xf32>
    %cst_101 = arith.constant 1.000000e+00 : f32
    %292 = vector.broadcast %cst_101 : f32 to vector<2x16xf32>
    %293 = arith.addf %292, %291 : vector<2x16xf32>
    %294 = arith.mulf %288, %293 : vector<2x16xf32>
    %c0_102 = arith.constant 0 : index
    %c0_103 = arith.constant 0 : index
    %295 = vector.load %arg16[%c0_102, %c0_103] : memref<16x128xf32, #tpu.memory_space<vmem>>, vector<16x128xf32>
    %cst_104 = arith.constant dense<0.000000e+00> : vector<2x128xf32>
    %296 = tpu.matmul %294, %295, %cst_104 {dimension_numbers = #tpu.dot_dimension_numbers<[1], [0], [0], [1], [0, 0, 1, 1], [], []>} : vector<2x16xf32>, vector<16x128xf32>, vector<2x128xf32> -> vector<2x128xf32>
    %c0_105 = arith.constant 0 : index
    %c0_106 = arith.constant 0 : index
    %297 = vector.load %arg17[%c0_105, %c0_106] : memref<1x128xf32, #tpu.memory_space<vmem>>, vector<1x128xf32>
    %298 = vector.broadcast %297 : vector<1x128xf32> to vector<2x128xf32>
    %299 = arith.addf %296, %298 : vector<2x128xf32>
    %c0_107 = arith.constant 0 : index
    %c0_108 = arith.constant 0 : index
    %300 = vector.load %arg20[%c0_107, %c0_108] : memref<2x128xf32, #tpu.memory_space<vmem>>, vector<2x128xf32>
    tpu.vector_store %arg20[%c0_107, %c0_108], %299 {strides = array<i32>} : memref<2x128xf32, #tpu.memory_space<vmem>>, vector<2x128xf32>,
    return
  }
}

</mosaic_0001>

<llo_original>
// kernel: sentimental_classifier.1
$region0: #{sentimental_classifier.1}
  #allocation0 [shape = 'u32[]', space=smem, size = 0x4, offset = 0x4, fixed_abs, tag = 'smem constant byte address 0x4 - core index']
  #allocation1 [shape = 'u32[72,128]{1,0:T(1,128)}', space=vmem, size = 0x9000, scoped, tag = 'internal scratch']
  %s0 = inlined_call_operand.vmem [shape: s32[16,1], index: 0, kind: input, shape index: {}]
  %s1 = inlined_call_operand.vmem [shape: f32[1,16], index: 1, kind: input, shape index: {}]
  %s2 = inlined_call_operand.vmem [shape: f32[50,32], index: 2, kind: input, shape index: {}]
  %s3 = inlined_call_operand.vmem [shape: f32[16,32], index: 3, kind: input, shape index: {}]
  %s4 = inlined_call_operand.vmem [shape: f32[16,16], index: 4, kind: input, shape index: {}]
  %s5 = inlined_call_operand.vmem [shape: f32[2,16], index: 5, kind: input, shape index: {}]
  %s6 = inlined_call_operand.vmem [shape: f32[32,96], index: 6, kind: input, shape index: {}]
  %s7 = inlined_call_operand.vmem [shape: f32[1,96], index: 7, kind: input, shape index: {}]
  %s8 = inlined_call_operand.vmem [shape: f32[32,32], index: 8, kind: input, shape index: {}]
  %s9 = inlined_call_operand.vmem [shape: f32[32,128], index: 9, kind: input, shape index: {}]
  %s10 = inlined_call_operand.vmem [shape: f32[1,128], index: 10, kind: input, shape index: {}]
  %s11 = inlined_call_operand.vmem [shape: f32[128,32], index: 11, kind: input, shape index: {}]
  %s12 = inlined_call_operand.vmem [shape: f32[32,16], index: 12, kind: input, shape index: {}]
  %s13 = inlined_call_operand.vmem [shape: f32[16,1], index: 13, kind: input, shape index: {}]
  %s14 = inlined_call_operand.vmem [shape: f32[32,32], index: 14, kind: input, shape index: {}]
  %s15 = inlined_call_operand.vmem [shape: f32[32,16], index: 15, kind: input, shape index: {}]
  %s16 = inlined_call_operand.vmem [shape: f32[16,128], index: 16, kind: input, shape index: {}]
  %s17 = inlined_call_operand.vmem [shape: f32[1,128], index: 17, kind: input, shape index: {}]
  %s18 = inlined_call_operand.vmem [shape: f32[11,32], index: 18, kind: input, shape index: {}]
  %s19 = inlined_call_operand.vmem [shape: f32[5,16], index: 19, kind: input, shape index: {}]
  %s20 = inlined_call_operand.hbm [shape: f32[2,128], index: 20, kind: output, shape index: {}]
  %s21 = sld [smem:[#allocation0]]
  $region90: #{sentimental_classifier.1} parent=0
    _
  %s23 = ssub.s32 1, %s21
  %s24 = scalar_select 0, %s23, %s21
  $region1: #{sentimental_classifier.1} parent=0
    #allocation2 [shape = 'u8[1024]{0}', space=vmem, size = 0x400, scoped, tag = 'output window, operand 0, single buffered']
    #allocation3 [shape = 's32[1]{0}', space=sflag, size = 0x4, scoped, tag = 'scoped memory for sentimental_classifier.1']
    %25 = vsyncpa [#allocation3], 0
    // Predicated region
    $region2: #{sentimental_classifier.1} parent=1 // pred_check
      _
    $region3: #{sentimental_classifier.1} parent=1 // pred_check_branch
      %27 = sbr.rel (0) target = $region5
    $region4: #{sentimental_classifier.1} parent=1 // pred_region
      _
    $region5: #{sentimental_classifier.1} parent=1 // pred_fallthru
      _
    // Predicated region
    $region6: #{sentimental_classifier.1} parent=1 // pred_check
      _
    $region7: #{sentimental_classifier.1} parent=1 // pred_check_branch
      %29 = sbr.rel (0) target = $region9
    $region8: #{sentimental_classifier.1} parent=1 // pred_region
      _
    $region9: #{sentimental_classifier.1} parent=1 // pred_fallthru
      _
    // Predicated region
    $region10: #{sentimental_classifier.1} parent=1 // pred_check
      _
    $region11: #{sentimental_classifier.1} parent=1 // pred_check_branch
      %31 = sbr.rel (0) target = $region13
    $region12: #{sentimental_classifier.1} parent=1 // pred_region
      _
    $region13: #{sentimental_classifier.1} parent=1 // pred_fallthru
      _
    // Predicated region
    $region14: #{sentimental_classifier.1} parent=1 // pred_check
      _
    $region15: #{sentimental_classifier.1} parent=1 // pred_check_branch
      %33 = sbr.rel (0) target = $region17
    $region16: #{sentimental_classifier.1} parent=1 // pred_region
      _
    $region17: #{sentimental_classifier.1} parent=1 // pred_fallthru
      _
    // Predicated region
    $region18: #{sentimental_classifier.1} parent=1 // pred_check
      _
    $region19: #{sentimental_classifier.1} parent=1 // pred_check_branch
      %35 = sbr.rel (0) target = $region21
    $region20: #{sentimental_classifier.1} parent=1 // pred_region
      _
    $region21: #{sentimental_classifier.1} parent=1 // pred_fallthru
      _
    // Predicated region
    $region22: #{sentimental_classifier.1} parent=1 // pred_check
      _
    $region23: #{sentimental_classifier.1} parent=1 // pred_check_branch
      %37 = sbr.rel (0) target = $region25
    $region24: #{sentimental_classifier.1} parent=1 // pred_region
      _
    $region25: #{sentimental_classifier.1} parent=1 // pred_fallthru
      _
    // Predicated region
    $region26: #{sentimental_classifier.1} parent=1 // pred_check
      _
    $region27: #{sentimental_classifier.1} parent=1 // pred_check_branch
      %39 = sbr.rel (0) target = $region29
    $region28: #{sentimental_classifier.1} parent=1 // pred_region
      _
    $region29: #{sentimental_classifier.1} parent=1 // pred_fallthru
      _
    // Predicated region
    $region30: #{sentimental_classifier.1} parent=1 // pred_check
      _
    $region31: #{sentimental_classifier.1} parent=1 // pred_check_branch
      %41 = sbr.rel (0) target = $region33
    $region32: #{sentimental_classifier.1} parent=1 // pred_region
      _
    $region33: #{sentimental_classifier.1} parent=1 // pred_fallthru
      _
    // Predicated region
    $region34: #{sentimental_classifier.1} parent=1 // pred_check
      _
    $region35: #{sentimental_classifier.1} parent=1 // pred_check_branch
      %43 = sbr.rel (0) target = $region37
    $region36: #{sentimental_classifier.1} parent=1 // pred_region
      _
    $region37: #{sentimental_classifier.1} parent=1 // pred_fallthru
      _
    // Predicated region
    $region38: #{sentimental_classifier.1} parent=1 // pred_check
      _
    $region39: #{sentimental_classifier.1} parent=1 // pred_check_branch
      %45 = sbr.rel (0) target = $region41
    $region40: #{sentimental_classifier.1} parent=1 // pred_region
      _
    $region41: #{sentimental_classifier.1} parent=1 // pred_fallthru
      _
    // Predicated region
    $region42: #{sentimental_classifier.1} parent=1 // pred_check
      _
    $region43: #{sentimental_classifier.1} parent=1 // pred_check_branch
      %47 = sbr.rel (0) target = $region45
    $region44: #{sentimental_classifier.1} parent=1 // pred_region
      _
    $region45: #{sentimental_classifier.1} parent=1 // pred_fallthru
      _
    // Predicated region
    $region46: #{sentimental_classifier.1} parent=1 // pred_check
      _
    $region47: #{sentimental_classifier.1} parent=1 // pred_check_branch
      %49 = sbr.rel (0) target = $region49
    $region48: #{sentimental_classifier.1} parent=1 // pred_region
      _
    $region49: #{sentimental_classifier.1} parent=1 // pred_fallthru
      _
    // Predicated region
    $region50: #{sentimental_classifier.1} parent=1 // pred_check
      _
    $region51: #{sentimental_classifier.1} parent=1 // pred_check_branch
      %51 = sbr.rel (0) target = $region53
    $region52: #{sentimental_classifier.1} parent=1 // pred_region
      _
    $region53: #{sentimental_classifier.1} parent=1 // pred_fallthru
      _
    // Predicated region
    $region54: #{sentimental_classifier.1} parent=1 // pred_check
      _
    $region55: #{sentimental_classifier.1} parent=1 // pred_check_branch
      %53 = sbr.rel (0) target = $region57
    $region56: #{sentimental_classifier.1} parent=1 // pred_region
      _
    $region57: #{sentimental_classifier.1} parent=1 // pred_fallthru
      _
    // Predicated region
    $region58: #{sentimental_classifier.1} parent=1 // pred_check
      _
    $region59: #{sentimental_classifier.1} parent=1 // pred_check_branch
      %55 = sbr.rel (0) target = $region61
    $region60: #{sentimental_classifier.1} parent=1 // pred_region
      _
    $region61: #{sentimental_classifier.1} parent=1 // pred_fallthru
      _
    // Predicated region
    $region62: #{sentimental_classifier.1} parent=1 // pred_check
      _
    $region63: #{sentimental_classifier.1} parent=1 // pred_check_branch
      %57 = sbr.rel (0) target = $region65
    $region64: #{sentimental_classifier.1} parent=1 // pred_region
      _
    $region65: #{sentimental_classifier.1} parent=1 // pred_fallthru
      _
    // Predicated region
    $region66: #{sentimental_classifier.1} parent=1 // pred_check
      _
    $region67: #{sentimental_classifier.1} parent=1 // pred_check_branch
      %59 = sbr.rel (0) target = $region69
    $region68: #{sentimental_classifier.1} parent=1 // pred_region
      _
    $region69: #{sentimental_classifier.1} parent=1 // pred_fallthru
      _
    // Predicated region
    $region70: #{sentimental_classifier.1} parent=1 // pred_check
      _
    $region71: #{sentimental_classifier.1} parent=1 // pred_check_branch
      %61 = sbr.rel (0) target = $region73
    $region72: #{sentimental_classifier.1} parent=1 // pred_region
      _
    $region73: #{sentimental_classifier.1} parent=1 // pred_fallthru
      _
    // Predicated region
    $region74: #{sentimental_classifier.1} parent=1 // pred_check
      _
    $region75: #{sentimental_classifier.1} parent=1 // pred_check_branch
      %63 = sbr.rel (0) target = $region77
    $region76: #{sentimental_classifier.1} parent=1 // pred_region
      _
    $region77: #{sentimental_classifier.1} parent=1 // pred_fallthru
      _
    // Predicated region
    $region78: #{sentimental_classifier.1} parent=1 // pred_check
      _
    $region79: #{sentimental_classifier.1} parent=1 // pred_check_branch
      %65 = sbr.rel (0) target = $region81
    $region80: #{sentimental_classifier.1} parent=1 // pred_region
      _
    $region81: #{sentimental_classifier.1} parent=1 // pred_fallthru
      _
    %v66 = vld [vmem:[%s18] sm:$0xff]
    %v67 = vld [vmem:[%s18 + $0x8] sm:$0x7]
    %v68 = vld [vmem:[%s19] sm:$0x1f]
    %v69 = vld [vmem:[%s0] sm:$0xff]
    %v70 = vld [vmem:[%s0 + $0x8] sm:$0xff]
    %v71 = vlaneseq
    %v72 = vand.u32 %v71, 127
    %73 = vset.pattern.permute.xlu0 0
    %74 = vperm.xlu0 %73, %v69
    %v75 = vpop.permute.xlu0 %74
    %76 = vset.pattern.permute.xlu0 0
    %77 = vperm.xlu0 %76, %v70
    %v78 = vpop.permute.xlu0 %77
    %vm79 = vcmp.eq.s32.totalorder %v75, %v72
    %vm80 = vcmp.eq.s32.totalorder %v78, %v72
    %v81 = vsel %vm79, 1, 0
    %v82 = vsel %vm80, 1, 0
    %v83 = vcvt.s32.f32 %v81
    %v84 = vcvt.s32.f32 %v82
    %v85 = vld [vmem:[%s2] sm:$0xff]
    %v86 = vld [vmem:[%s2 + $0x8] sm:$0xff]
    %v87 = vld [vmem:[%s2 + $0x10] sm:$0xff]
    %v88 = vld [vmem:[%s2 + $0x18] sm:$0xff]
    %v89 = vld [vmem:[%s2 + $0x20] sm:$0xff]
    %v90 = vld [vmem:[%s2 + $0x28] sm:$0xff]
    %v91 = vld [vmem:[%s2 + $0x30] sm:$0x3]
    %v92 = vld [vmem:[%s3] sm:$0xff]
    %v93 = vld [vmem:[%s3 + $0x8] sm:$0xff]
    %vm94 = vcmask 408576
    %v96 = vsel %vm94, %v83, 0
    %v99 = vsel %vm94, %v84, 0
    %vm101 = vcmask 1041408
    %v103 = vsel %vm101, %v91, 0
    %105 = vmatpush.msra.mxu0 0.0
    %106 = vmatpush.msra.mxu0 0.0
    %107 = vmatpush.msra.mxu0 0.0
    %108 = vmatpush.msra.mxu0 0.0
    %109 = vmatpush.msra.mxu0 0.0
    %110 = vmatpush.msra.mxu0 0.0
    %111 = vmatpush.msra.mxu0 0.0
    %112 = vmatpush.msra.mxu0 0.0
    %113 = vmatpush.msra.mxu0 0.0
    %114 = vmatpush.msra.mxu0 %v103
    %115 = vmatpush.msra.mxu0 %v90
    %116 = vmatpush.msra.mxu0 %v89
    %117 = vmatpush.msra.mxu0 %v88
    %118 = vmatpush.msra.mxu0 %v87
    %119 = vmatpush.msra.mxu0 %v86
    %120 = vmatpush.msra.mxu0 %v85
    %121 = vmatmul.f32.gmra.mxu0 %v96
    %v122 = vpop.f32.mrf.mxu0
    %v123 = vadd.f32 %v92, %v122
    %124 = vmatmul.f32.gmra.mxu0 %v99
    %v125 = vpop.f32.mrf.mxu0
    %v126 = vadd.f32 %v93, %v125
    %127 = vdwg.mxu0
    %vm128 = vcmask 261120
    %v129 = vsel %vm128, %v123, 0.0
    %130 = vadd.xlane.f32.xlu0 %v129
    %v131 = vpop.xlane.xlu0 %130
    %v132 = vsel %vm128, %v126, 0.0
    %133 = vadd.xlane.f32.xlu0 %v132
    %v134 = vpop.xlane.xlu0 %133
    %v135 = vrcp.pop 32.0
    %v136 = vmul.f32 32.0, %v135
    %v137 = vsub.f32 1.0, %v136
    %v138 = vmul.f32 %v135, %v137
    %v139 = vadd.f32 %v135, %v138
    %vm140 = vweird.f32 %v135
    %v141 = vsel %vm140, %v135, %v139
    %v142 = vmul.f32 %v131, %v141
    %v143 = vmul.f32 %v134, %v141
    %v144 = vsub.f32 %v123, %v142
    %v145 = vsub.f32 %v126, %v143
    %v146 = vmul.f32 %v144, %v144
    %v147 = vmul.f32 %v145, %v145
    %v148 = vsel %vm128, %v146, 0.0
    %149 = vadd.xlane.f32.xlu0 %v148
    %v150 = vpop.xlane.xlu0 %149
    %v151 = vsel %vm128, %v147, 0.0
    %152 = vadd.xlane.f32.xlu0 %v151
    %v153 = vpop.xlane.xlu0 %152
    %v154 = vmul.f32 %v150, %v141
    %v155 = vmul.f32 %v153, %v141
    %v156 = vadd.f32 %v154, 1e-12
    %v157 = vadd.f32 %v155, 1e-12
    %v158 = vrsqrt.pop %v156
    %v159 = vmul.f32 %v158, %v156
    %v160 = vmul.f32 %v159, %v158
    %v161 = vmul.f32 0.5, %v160
    %v162 = vsub.f32 1.5, %v161
    %v163 = vmul.f32 %v158, %v162
    %vm164 = vweird.f32 %v156
    %vm165 = vweird.f32 %v158
    %vm166 = vmor %vm164, %vm165
    %v167 = vsel %vm166, %v158, %v163
    %v168 = vrsqrt.pop %v157
    %v169 = vmul.f32 %v168, %v157
    %v170 = vmul.f32 %v169, %v168
    %v171 = vmul.f32 0.5, %v170
    %v172 = vsub.f32 1.5, %v171
    %v173 = vmul.f32 %v168, %v172
    %vm174 = vweird.f32 %v157
    %vm175 = vweird.f32 %v168
    %vm176 = vmor %vm174, %vm175
    %v177 = vsel %vm176, %v168, %v173
    %v178 = vmul.f32 %v144, %v167
    %v179 = vmul.f32 %v145, %v177
    %v180 = vperm.slane %v66, 0
    %v181 = vmul.f32 %v178, %v180
    %v182 = vmul.f32 %v179, %v180
    %v183 = vperm.slane %v66, 1
    %v184 = vadd.f32 %v181, %v183
    %v185 = vadd.f32 %v182, %v183
    %v186 = vld [vmem:[%s1] sm:$0x1]
    %v187 = vld [vmem:[%s4] sm:$0xff]
    %v188 = vld [vmem:[%s4 + $0x8] sm:$0xff]
    %v190 = vperm.slane %v186, 0
    %v192 = vmul.f32 %v187, %v190
    %v193 = vmul.f32 %v188, %v190
    %v194 = vsub.f32 %v192, 1.0
    %v195 = vsub.f32 %v193, 1.0
    %v196 = vmul.f32 %v194, 1e+09
    %v197 = vmul.f32 %v195, 1e+09
    %v198 = vld [vmem:[%s6] sm:$0xff]
    %v199 = vld [vmem:[%s6 + $0x8] sm:$0xff]
    %v200 = vld [vmem:[%s6 + $0x10] sm:$0xff]
    %v201 = vld [vmem:[%s6 + $0x18] sm:$0xff]
    %v202 = vld [vmem:[%s7] sm:$0x1]
    %v204 = vperm.slane %v202, 0
    %v207 = vsel %vm128, %v184, 0
    %v210 = vsel %vm128, %v185, 0
    %212 = vmatpush.msra.mxu0 0.0
    %213 = vmatpush.msra.mxu0 0.0
    %214 = vmatpush.msra.mxu0 0.0
    %215 = vmatpush.msra.mxu0 0.0
    %216 = vmatpush.msra.mxu0 0.0
    %217 = vmatpush.msra.mxu0 0.0
    %218 = vmatpush.msra.mxu0 0.0
    %219 = vmatpush.msra.mxu0 0.0
    %220 = vmatpush.msra.mxu0 0.0
    %221 = vmatpush.msra.mxu0 0.0
    %222 = vmatpush.msra.mxu0 0.0
    %223 = vmatpush.msra.mxu0 0.0
    %224 = vmatpush.msra.mxu0 %v201
    %225 = vmatpush.msra.mxu0 %v200
    %226 = vmatpush.msra.mxu0 %v199
    %227 = vmatpush.msra.mxu0 %v198
    %228 = vmatmul.f32.gmra.mxu0 %v207
    %v229 = vpop.f32.mrf.mxu0
    %v230 = vadd.f32 %v204, %v229
    %231 = vmatmul.f32.gmra.mxu0 %v210
    %v232 = vpop.f32.mrf.mxu0
    %v233 = vadd.f32 %v204, %v232
    %234 = vdwg.mxu0
    %237 = vrot.lane.b32.xlu0 %v230, 96
    %v238 = vpop.permute.xlu0 %237
    %239 = vrot.lane.b32.xlu0 %v233, 96
    %v240 = vpop.permute.xlu0 %239
    %vm241 = vcmask 64512
    %v242 = vsel %vm241, %v230, 0
    %v244 = vsel %vm241, %v233, 0
    %v246 = vsel %vm241, %v238, 0
    %v248 = vsel %vm241, %v240, 0
    %250 = vmatpush.xpose.msra.mxu0 0.0
    %251 = vmatpush.xpose.msra.mxu0 0.0
    %252 = vmatpush.xpose.msra.mxu0 0.0
    %253 = vmatpush.xpose.msra.mxu0 0.0
    %254 = vmatpush.xpose.msra.mxu0 0.0
    %255 = vmatpush.xpose.msra.mxu0 0.0
    %256 = vmatpush.xpose.msra.mxu0 0.0
    %257 = vmatpush.xpose.msra.mxu0 0.0
    %258 = vmatpush.xpose.msra.mxu0 0.0
    %259 = vmatpush.xpose.msra.mxu0 0.0
    %260 = vmatpush.xpose.msra.mxu0 0.0
    %261 = vmatpush.xpose.msra.mxu0 0.0
    %262 = vmatpush.xpose.msra.mxu0 0.0
    %263 = vmatpush.xpose.msra.mxu0 0.0
    %264 = vmatpush.xpose.msra.mxu0 %v248
    %265 = vmatpush.xpose.msra.mxu0 %v246
    %266 = vmatmul.f32.gmra.mxu0 %v242
    %v267 = vpop.f32.mrf.mxu0
    %v268 = vadd.f32 0.0, %v267
    %269 = vmatmul.f32.gmra.mxu0 %v244
    %v270 = vpop.f32.mrf.mxu0
    %v271 = vadd.f32 0.0, %v270
    %272 = vdwg.mxu0
    %v273 = vmul.f32 %v268, 0.35355338
    %v274 = vmul.f32 %v271, 0.35355338
    %v275 = vadd.f32 %v273, %v196
    %v276 = vadd.f32 %v274, %v197
    %vm277 = vcmask 130048
    %v278 = vsel %vm277, %v275, -inf
    %279 = vmax.xlane.f32.xlu0 %v278
    %v280 = vpop.xlane.xlu0 %279
    %v281 = vsel %vm277, %v276, -inf
    %282 = vmax.xlane.f32.xlu0 %v281
    %v283 = vpop.xlane.xlu0 %282
    %v284 = vsub.f32 %v275, %v280
    %v285 = vsub.f32 %v276, %v283
    %v286 = vmul.f32 %v284, 1.442695
    %v287 = vpow.pop %v286
    %v288 = vmul.f32 %v285, 1.442695
    %v289 = vpow.pop %v288
    %v290 = vsel %vm277, %v287, 0.0
    %291 = vadd.xlane.f32.xlu0 %v290
    %v292 = vpop.xlane.xlu0 %291
    %v293 = vsel %vm277, %v289, 0.0
    %294 = vadd.xlane.f32.xlu0 %v293
    %v295 = vpop.xlane.xlu0 %294
    %v296 = vrcp.pop %v292
    %v297 = vrcp.pop %v295
    %v298 = vmul.f32 %v287, %v296
    %v299 = vmul.f32 %v289, %v297
    %300 = vrot.lane.b32.xlu0 %v230, 64
    %v301 = vpop.permute.xlu0 %300
    %302 = vrot.lane.b32.xlu0 %v233, 64
    %v303 = vpop.permute.xlu0 %302
    %v307 = vsel %vm277, %v298, 0
    %v310 = vsel %vm277, %v299, 0
    %312 = vmatpush.msra.mxu0 0.0
    %313 = vmatpush.msra.mxu0 0.0
    %314 = vmatpush.msra.mxu0 0.0
    %315 = vmatpush.msra.mxu0 0.0
    %316 = vmatpush.msra.mxu0 0.0
    %317 = vmatpush.msra.mxu0 0.0
    %318 = vmatpush.msra.mxu0 0.0
    %319 = vmatpush.msra.mxu0 0.0
    %320 = vmatpush.msra.mxu0 0.0
    %321 = vmatpush.msra.mxu0 0.0
    %322 = vmatpush.msra.mxu0 0.0
    %323 = vmatpush.msra.mxu0 0.0
    %324 = vmatpush.msra.mxu0 0.0
    %325 = vmatpush.msra.mxu0 0.0
    %326 = vmatpush.msra.mxu0 %v303
    %327 = vmatpush.msra.mxu0 %v301
    %328 = vmatmul.f32.gmra.mxu0 %v307
    %v329 = vpop.f32.mrf.mxu0
    %v330 = vadd.f32 0.0, %v329
    %331 = vmatmul.f32.gmra.mxu0 %v310
    %v332 = vpop.f32.mrf.mxu0
    %v333 = vadd.f32 0.0, %v332
    %334 = vdwg.mxu0
    %335 = vrot.lane.b32.xlu0 %v230, 120
    %v336 = vpop.permute.xlu0 %335
    %337 = vrot.lane.b32.xlu0 %v233, 120
    %v338 = vpop.permute.xlu0 %337
    %339 = vrot.lane.b32.xlu0 %v230, 88
    %v340 = vpop.permute.xlu0 %339
    %341 = vrot.lane.b32.xlu0 %v233, 88
    %v342 = vpop.permute.xlu0 %341
    %v343 = vsel %vm241, %v336, 0
    %v345 = vsel %vm241, %v338, 0
    %v347 = vsel %vm241, %v340, 0
    %v349 = vsel %vm241, %v342, 0
    %351 = vmatpush.xpose.msra.mxu0 0.0
    %352 = vmatpush.xpose.msra.mxu0 0.0
    %353 = vmatpush.xpose.msra.mxu0 0.0
    %354 = vmatpush.xpose.msra.mxu0 0.0
    %355 = vmatpush.xpose.msra.mxu0 0.0
    %356 = vmatpush.xpose.msra.mxu0 0.0
    %357 = vmatpush.xpose.msra.mxu0 0.0
    %358 = vmatpush.xpose.msra.mxu0 0.0
    %359 = vmatpush.xpose.msra.mxu0 0.0
    %360 = vmatpush.xpose.msra.mxu0 0.0
    %361 = vmatpush.xpose.msra.mxu0 0.0
    %362 = vmatpush.xpose.msra.mxu0 0.0
    %363 = vmatpush.xpose.msra.mxu0 0.0
    %364 = vmatpush.xpose.msra.mxu0 0.0
    %365 = vmatpush.xpose.msra.mxu0 %v349
    %366 = vmatpush.xpose.msra.mxu0 %v347
    %367 = vmatmul.f32.gmra.mxu0 %v343
    %v368 = vpop.f32.mrf.mxu0
    %v369 = vadd.f32 0.0, %v368
    %370 = vmatmul.f32.gmra.mxu0 %v345
    %v371 = vpop.f32.mrf.mxu0
    %v372 = vadd.f32 0.0, %v371
    %373 = vdwg.mxu0
    %v374 = vmul.f32 %v369, 0.35355338
    %v375 = vmul.f32 %v372, 0.35355338
    %v376 = vadd.f32 %v374, %v196
    %v377 = vadd.f32 %v375, %v197
    %v378 = vsel %vm277, %v376, -inf
    %379 = vmax.xlane.f32.xlu0 %v378
    %v380 = vpop.xlane.xlu0 %379
    %v381 = vsel %vm277, %v377, -inf
    %382 = vmax.xlane.f32.xlu0 %v381
    %v383 = vpop.xlane.xlu0 %382
    %v384 = vsub.f32 %v376, %v380
    %v385 = vsub.f32 %v377, %v383
    %v386 = vmul.f32 %v384, 1.442695
    %v387 = vpow.pop %v386
    %v388 = vmul.f32 %v385, 1.442695
    %v389 = vpow.pop %v388
    %v390 = vsel %vm277, %v387, 0.0
    %391 = vadd.xlane.f32.xlu0 %v390
    %v392 = vpop.xlane.xlu0 %391
    %v393 = vsel %vm277, %v389, 0.0
    %394 = vadd.xlane.f32.xlu0 %v393
    %v395 = vpop.xlane.xlu0 %394
    %v396 = vrcp.pop %v392
    %v397 = vrcp.pop %v395
    %v398 = vmul.f32 %v387, %v396
    %v399 = vmul.f32 %v389, %v397
    %400 = vrot.lane.b32.xlu0 %v230, 56
    %v401 = vpop.permute.xlu0 %400
    %402 = vrot.lane.b32.xlu0 %v233, 56
    %v403 = vpop.permute.xlu0 %402
    %v407 = vsel %vm277, %v398, 0
    %v410 = vsel %vm277, %v399, 0
    %412 = vmatpush.msra.mxu0 0.0
    %413 = vmatpush.msra.mxu0 0.0
    %414 = vmatpush.msra.mxu0 0.0
    %415 = vmatpush.msra.mxu0 0.0
    %416 = vmatpush.msra.mxu0 0.0
    %417 = vmatpush.msra.mxu0 0.0
    %418 = vmatpush.msra.mxu0 0.0
    %419 = vmatpush.msra.mxu0 0.0
    %420 = vmatpush.msra.mxu0 0.0
    %421 = vmatpush.msra.mxu0 0.0
    %422 = vmatpush.msra.mxu0 0.0
    %423 = vmatpush.msra.mxu0 0.0
    %424 = vmatpush.msra.mxu0 0.0
    %425 = vmatpush.msra.mxu0 0.0
    %426 = vmatpush.msra.mxu0 %v403
    %427 = vmatpush.msra.mxu0 %v401
    %428 = vmatmul.f32.gmra.mxu0 %v407
    %v429 = vpop.f32.mrf.mxu0
    %v430 = vadd.f32 0.0, %v429
    %431 = vmatmul.f32.gmra.mxu0 %v410
    %v432 = vpop.f32.mrf.mxu0
    %v433 = vadd.f32 0.0, %v432
    %434 = vdwg.mxu0
    %435 = vrot.lane.b32.xlu0 %v230, 112
    %v436 = vpop.permute.xlu0 %435
    %437 = vrot.lane.b32.xlu0 %v233, 112
    %v438 = vpop.permute.xlu0 %437
    %439 = vrot.lane.b32.xlu0 %v230, 80
    %v440 = vpop.permute.xlu0 %439
    %441 = vrot.lane.b32.xlu0 %v233, 80
    %v442 = vpop.permute.xlu0 %441
    %v443 = vsel %vm241, %v436, 0
    %v445 = vsel %vm241, %v438, 0
    %v447 = vsel %vm241, %v440, 0
    %v449 = vsel %vm241, %v442, 0
    %451 = vmatpush.xpose.msra.mxu0 0.0
    %452 = vmatpush.xpose.msra.mxu0 0.0
    %453 = vmatpush.xpose.msra.mxu0 0.0
    %454 = vmatpush.xpose.msra.mxu0 0.0
    %455 = vmatpush.xpose.msra.mxu0 0.0
    %456 = vmatpush.xpose.msra.mxu0 0.0
    %457 = vmatpush.xpose.msra.mxu0 0.0
    %458 = vmatpush.xpose.msra.mxu0 0.0
    %459 = vmatpush.xpose.msra.mxu0 0.0
    %460 = vmatpush.xpose.msra.mxu0 0.0
    %461 = vmatpush.xpose.msra.mxu0 0.0
    %462 = vmatpush.xpose.msra.mxu0 0.0
    %463 = vmatpush.xpose.msra.mxu0 0.0
    %464 = vmatpush.xpose.msra.mxu0 0.0
    %465 = vmatpush.xpose.msra.mxu0 %v449
    %466 = vmatpush.xpose.msra.mxu0 %v447
    %467 = vmatmul.f32.gmra.mxu0 %v443
    %v468 = vpop.f32.mrf.mxu0
    %v469 = vadd.f32 0.0, %v468
    %470 = vmatmul.f32.gmra.mxu0 %v445
    %v471 = vpop.f32.mrf.mxu0
    %v472 = vadd.f32 0.0, %v471
    %473 = vdwg.mxu0
    %v474 = vmul.f32 %v469, 0.35355338
    %v475 = vmul.f32 %v472, 0.35355338
    %v476 = vadd.f32 %v474, %v196
    %v477 = vadd.f32 %v475, %v197
    %v478 = vsel %vm277, %v476, -inf
    %479 = vmax.xlane.f32.xlu0 %v478
    %v480 = vpop.xlane.xlu0 %479
    %v481 = vsel %vm277, %v477, -inf
    %482 = vmax.xlane.f32.xlu0 %v481
    %v483 = vpop.xlane.xlu0 %482
    %v484 = vsub.f32 %v476, %v480
    %v485 = vsub.f32 %v477, %v483
    %v486 = vmul.f32 %v484, 1.442695
    %v487 = vpow.pop %v486
    %v488 = vmul.f32 %v485, 1.442695
    %v489 = vpow.pop %v488
    %v490 = vsel %vm277, %v487, 0.0
    %491 = vadd.xlane.f32.xlu0 %v490
    %v492 = vpop.xlane.xlu0 %491
    %v493 = vsel %vm277, %v489, 0.0
    %494 = vadd.xlane.f32.xlu0 %v493
    %v495 = vpop.xlane.xlu0 %494
    %v496 = vrcp.pop %v492
    %v497 = vrcp.pop %v495
    %v498 = vmul.f32 %v487, %v496
    %v499 = vmul.f32 %v489, %v497
    %500 = vrot.lane.b32.xlu0 %v230, 48
    %v501 = vpop.permute.xlu0 %500
    %502 = vrot.lane.b32.xlu0 %v233, 48
    %v503 = vpop.permute.xlu0 %502
    %v507 = vsel %vm277, %v498, 0
    %v510 = vsel %vm277, %v499, 0
    %512 = vmatpush.msra.mxu0 0.0
    %513 = vmatpush.msra.mxu0 0.0
    %514 = vmatpush.msra.mxu0 0.0
    %515 = vmatpush.msra.mxu0 0.0
    %516 = vmatpush.msra.mxu0 0.0
    %517 = vmatpush.msra.mxu0 0.0
    %518 = vmatpush.msra.mxu0 0.0
    %519 = vmatpush.msra.mxu0 0.0
    %520 = vmatpush.msra.mxu0 0.0
    %521 = vmatpush.msra.mxu0 0.0
    %522 = vmatpush.msra.mxu0 0.0
    %523 = vmatpush.msra.mxu0 0.0
    %524 = vmatpush.msra.mxu0 0.0
    %525 = vmatpush.msra.mxu0 0.0
    %526 = vmatpush.msra.mxu0 %v503
    %527 = vmatpush.msra.mxu0 %v501
    %528 = vmatmul.f32.gmra.mxu0 %v507
    %v529 = vpop.f32.mrf.mxu0
    %v530 = vadd.f32 0.0, %v529
    %531 = vmatmul.f32.gmra.mxu0 %v510
    %v532 = vpop.f32.mrf.mxu0
    %v533 = vadd.f32 0.0, %v532
    %534 = vdwg.mxu0
    %535 = vrot.lane.b32.xlu0 %v230, 104
    %v536 = vpop.permute.xlu0 %535
    %537 = vrot.lane.b32.xlu0 %v233, 104
    %v538 = vpop.permute.xlu0 %537
    %539 = vrot.lane.b32.xlu0 %v230, 72
    %v540 = vpop.permute.xlu0 %539
    %541 = vrot.lane.b32.xlu0 %v233, 72
    %v542 = vpop.permute.xlu0 %541
    %v543 = vsel %vm241, %v536, 0
    %v545 = vsel %vm241, %v538, 0
    %v547 = vsel %vm241, %v540, 0
    %v549 = vsel %vm241, %v542, 0
    %551 = vmatpush.xpose.msra.mxu0 0.0
    %552 = vmatpush.xpose.msra.mxu0 0.0
    %553 = vmatpush.xpose.msra.mxu0 0.0
    %554 = vmatpush.xpose.msra.mxu0 0.0
    %555 = vmatpush.xpose.msra.mxu0 0.0
    %556 = vmatpush.xpose.msra.mxu0 0.0
    %557 = vmatpush.xpose.msra.mxu0 0.0
    %558 = vmatpush.xpose.msra.mxu0 0.0
    %559 = vmatpush.xpose.msra.mxu0 0.0
    %560 = vmatpush.xpose.msra.mxu0 0.0
    %561 = vmatpush.xpose.msra.mxu0 0.0
    %562 = vmatpush.xpose.msra.mxu0 0.0
    %563 = vmatpush.xpose.msra.mxu0 0.0
    %564 = vmatpush.xpose.msra.mxu0 0.0
    %565 = vmatpush.xpose.msra.mxu0 %v549
    %566 = vmatpush.xpose.msra.mxu0 %v547
    %567 = vmatmul.f32.gmra.mxu0 %v543
    %v568 = vpop.f32.mrf.mxu0
    %v569 = vadd.f32 0.0, %v568
    %570 = vmatmul.f32.gmra.mxu0 %v545
    %v571 = vpop.f32.mrf.mxu0
    %v572 = vadd.f32 0.0, %v571
    %573 = vdwg.mxu0
    %v574 = vmul.f32 %v569, 0.35355338
    %v575 = vmul.f32 %v572, 0.35355338
    %v576 = vadd.f32 %v574, %v196
    %v577 = vadd.f32 %v575, %v197
    %v578 = vsel %vm277, %v576, -inf
    %579 = vmax.xlane.f32.xlu0 %v578
    %v580 = vpop.xlane.xlu0 %579
    %v581 = vsel %vm277, %v577, -inf
    %582 = vmax.xlane.f32.xlu0 %v581
    %v583 = vpop.xlane.xlu0 %582
    %v584 = vsub.f32 %v576, %v580
    %v585 = vsub.f32 %v577, %v583
    %v586 = vmul.f32 %v584, 1.442695
    %v587 = vpow.pop %v586
    %v588 = vmul.f32 %v585, 1.442695
    %v589 = vpow.pop %v588
    %v590 = vsel %vm277, %v587, 0.0
    %591 = vadd.xlane.f32.xlu0 %v590
    %v592 = vpop.xlane.xlu0 %591
    %v593 = vsel %vm277, %v589, 0.0
    %594 = vadd.xlane.f32.xlu0 %v593
    %v595 = vpop.xlane.xlu0 %594
    %v596 = vrcp.pop %v592
    %v597 = vrcp.pop %v595
    %v598 = vmul.f32 %v587, %v596
    %v599 = vmul.f32 %v589, %v597
    %600 = vrot.lane.b32.xlu0 %v230, 40
    %v601 = vpop.permute.xlu0 %600
    %602 = vrot.lane.b32.xlu0 %v233, 40
    %v603 = vpop.permute.xlu0 %602
    %v607 = vsel %vm277, %v598, 0
    %v610 = vsel %vm277, %v599, 0
    %612 = vmatpush.msra.mxu0 0.0
    %613 = vmatpush.msra.mxu0 0.0
    %614 = vmatpush.msra.mxu0 0.0
    %615 = vmatpush.msra.mxu0 0.0
    %616 = vmatpush.msra.mxu0 0.0
    %617 = vmatpush.msra.mxu0 0.0
    %618 = vmatpush.msra.mxu0 0.0
    %619 = vmatpush.msra.mxu0 0.0
    %620 = vmatpush.msra.mxu0 0.0
    %621 = vmatpush.msra.mxu0 0.0
    %622 = vmatpush.msra.mxu0 0.0
    %623 = vmatpush.msra.mxu0 0.0
    %624 = vmatpush.msra.mxu0 0.0
    %625 = vmatpush.msra.mxu0 0.0
    %626 = vmatpush.msra.mxu0 %v603
    %627 = vmatpush.msra.mxu0 %v601
    %628 = vmatmul.f32.gmra.mxu0 %v607
    %v629 = vpop.f32.mrf.mxu0
    %v630 = vadd.f32 0.0, %v629
    %631 = vmatmul.f32.gmra.mxu0 %v610
    %v632 = vpop.f32.mrf.mxu0
    %v633 = vadd.f32 0.0, %v632
    %634 = vdwg.mxu0
    %637 = vrot.lane.b32.xlu0 %v430, 8
    %v638 = vpop.permute.xlu0 %637
    %639 = vrot.lane.b32.xlu0 %v433, 8
    %v640 = vpop.permute.xlu0 %639
    %645 = vrot.lane.b32.xlu0 %v530, 16
    %v646 = vpop.permute.xlu0 %645
    %647 = vrot.lane.b32.xlu0 %v533, 16
    %v648 = vpop.permute.xlu0 %647
    %653 = vrot.lane.b32.xlu0 %v630, 24
    %v654 = vpop.permute.xlu0 %653
    %655 = vrot.lane.b32.xlu0 %v633, 24
    %v656 = vpop.permute.xlu0 %655
    %v659 = vsel %vm241, %v330, %v638
    %v660 = vsel %vm241, %v333, %v640
    %v661 = vsel %vm277, %v659, %v646
    %v662 = vsel %vm277, %v660, %v648
    %vm663 = vcmask 195584
    %v664 = vsel %vm663, %v661, %v654
    %v665 = vsel %vm663, %v662, %v656
    %v666 = vld [vmem:[%s8] sm:$0xff]
    %v667 = vld [vmem:[%s8 + $0x8] sm:$0xff]
    %v668 = vld [vmem:[%s8 + $0x10] sm:$0xff]
    %v669 = vld [vmem:[%s8 + $0x18] sm:$0xff]
    %v670 = vperm.slane %v66, 2
    %v672 = vsel %vm128, %v664, 0
    %v675 = vsel %vm128, %v665, 0
    %677 = vmatpush.msra.mxu0 0.0
    %678 = vmatpush.msra.mxu0 0.0
    %679 = vmatpush.msra.mxu0 0.0
    %680 = vmatpush.msra.mxu0 0.0
    %681 = vmatpush.msra.mxu0 0.0
    %682 = vmatpush.msra.mxu0 0.0
    %683 = vmatpush.msra.mxu0 0.0
    %684 = vmatpush.msra.mxu0 0.0
    %685 = vmatpush.msra.mxu0 0.0
    %686 = vmatpush.msra.mxu0 0.0
    %687 = vmatpush.msra.mxu0 0.0
    %688 = vmatpush.msra.mxu0 0.0
    %689 = vmatpush.msra.mxu0 %v669
    %690 = vmatpush.msra.mxu0 %v668
    %691 = vmatpush.msra.mxu0 %v667
    %692 = vmatpush.msra.mxu0 %v666
    %693 = vmatmul.f32.gmra.mxu0 %v672
    %v694 = vpop.f32.mrf.mxu0
    %v695 = vadd.f32 %v670, %v694
    %696 = vmatmul.f32.gmra.mxu0 %v675
    %v697 = vpop.f32.mrf.mxu0
    %v698 = vadd.f32 %v670, %v697
    %699 = vdwg.mxu0
    %v700 = vadd.f32 %v184, %v695
    %v701 = vadd.f32 %v185, %v698
    %v702 = vsel %vm128, %v700, 0.0
    %703 = vadd.xlane.f32.xlu0 %v702
    %v704 = vpop.xlane.xlu0 %703
    %v705 = vsel %vm128, %v701, 0.0
    %706 = vadd.xlane.f32.xlu0 %v705
    %v707 = vpop.xlane.xlu0 %706
    %v708 = vmul.f32 %v704, %v141
    %v709 = vmul.f32 %v707, %v141
    %v710 = vsub.f32 %v700, %v708
    %v711 = vsub.f32 %v701, %v709
    %v712 = vmul.f32 %v710, %v710
    %v713 = vmul.f32 %v711, %v711
    %v714 = vsel %vm128, %v712, 0.0
    %715 = vadd.xlane.f32.xlu0 %v714
    %v716 = vpop.xlane.xlu0 %715
    %v717 = vsel %vm128, %v713, 0.0
    %718 = vadd.xlane.f32.xlu0 %v717
    %v719 = vpop.xlane.xlu0 %718
    %v720 = vmul.f32 %v716, %v141
    %v721 = vmul.f32 %v719, %v141
    %v722 = vadd.f32 %v720, 1e-12
    %v723 = vadd.f32 %v721, 1e-12
    %v724 = vrsqrt.pop %v722
    %v725 = vmul.f32 %v724, %v722
    %v726 = vmul.f32 %v725, %v724
    %v727 = vmul.f32 0.5, %v726
    %v728 = vsub.f32 1.5, %v727
    %v729 = vmul.f32 %v724, %v728
    %vm730 = vweird.f32 %v722
    %vm731 = vweird.f32 %v724
    %vm732 = vmor %vm730, %vm731
    %v733 = vsel %vm732, %v724, %v729
    %v734 = vrsqrt.pop %v723
    %v735 = vmul.f32 %v734, %v723
    %v736 = vmul.f32 %v735, %v734
    %v737 = vmul.f32 0.5, %v736
    %v738 = vsub.f32 1.5, %v737
    %v739 = vmul.f32 %v734, %v738
    %vm740 = vweird.f32 %v723
    %vm741 = vweird.f32 %v734
    %vm742 = vmor %vm740, %vm741
    %v743 = vsel %vm742, %v734, %v739
    %v744 = vmul.f32 %v710, %v733
    %v745 = vmul.f32 %v711, %v743
    %v746 = vperm.slane %v66, 3
    %v747 = vmul.f32 %v744, %v746
    %v748 = vmul.f32 %v745, %v746
    %v749 = vperm.slane %v66, 4
    %v750 = vadd.f32 %v747, %v749
    %v751 = vadd.f32 %v748, %v749
    %v752 = vld [vmem:[%s9] sm:$0xff]
    %v753 = vld [vmem:[%s9 + $0x8] sm:$0xff]
    %v754 = vld [vmem:[%s9 + $0x10] sm:$0xff]
    %v755 = vld [vmem:[%s9 + $0x18] sm:$0xff]
    %v756 = vld [vmem:[%s10] sm:$0x1]
    %v758 = vperm.slane %v756, 0
    %v761 = vsel %vm128, %v750, 0
    %v764 = vsel %vm128, %v751, 0
    %766 = vmatpush.msra.mxu0 0.0
    %767 = vmatpush.msra.mxu0 0.0
    %768 = vmatpush.msra.mxu0 0.0
    %769 = vmatpush.msra.mxu0 0.0
    %770 = vmatpush.msra.mxu0 0.0
    %771 = vmatpush.msra.mxu0 0.0
    %772 = vmatpush.msra.mxu0 0.0
    %773 = vmatpush.msra.mxu0 0.0
    %774 = vmatpush.msra.mxu0 0.0
    %775 = vmatpush.msra.mxu0 0.0
    %776 = vmatpush.msra.mxu0 0.0
    %777 = vmatpush.msra.mxu0 0.0
    %778 = vmatpush.msra.mxu0 %v755
    %779 = vmatpush.msra.mxu0 %v754
    %780 = vmatpush.msra.mxu0 %v753
    %781 = vmatpush.msra.mxu0 %v752
    %782 = vmatmul.f32.gmra.mxu0 %v761
    %v783 = vpop.f32.mrf.mxu0
    %v784 = vadd.f32 %v758, %v783
    %785 = vmatmul.f32.gmra.mxu0 %v764
    %v786 = vpop.f32.mrf.mxu0
    %v787 = vadd.f32 %v758, %v786
    %788 = vdwg.mxu0
    %v789 = vmul.f32 %v784, 0.5
    %v790 = vmul.f32 %v787, 0.5
    %v791 = vmul.f32 %v784, 0.70710677
    %v792 = vmul.f32 %v787, 0.70710677
    %v793 = vmul.f32 %v791, %v791
    %v794 = vmin.f32 16.0, %v793
    %v795 = vmul.f32 %v794, 2.1237322e-06
    %v796 = vadd.f32 %v795, 0.00028619796
    %v797 = vmul.f32 %v794, %v796
    %v798 = vadd.f32 %v797, 0.0036580483
    %v799 = vmul.f32 %v794, %v798
    %v800 = vadd.f32 %v799, 0.05243302
    %v801 = vmul.f32 %v794, %v800
    %v802 = vadd.f32 %v801, 0.18741608
    %v803 = vmul.f32 %v794, %v802
    %v804 = vadd.f32 %v803, 1.1283791
    %v805 = vmul.f32 %v791, %v804
    %v806 = vmul.f32 %v794, 3.8918573e-05
    %v807 = vadd.f32 %v806, 0.001143296
    %v808 = vmul.f32 %v794, %v807
    %v809 = vadd.f32 %v808, 0.014752088
    %v810 = vmul.f32 %v794, %v809
    %v811 = vadd.f32 %v810, 0.112945676
    %v812 = vmul.f32 %v794, %v811
    %v813 = vadd.f32 %v812, 0.4994258
    %v814 = vmul.f32 %v794, %v813
    %v815 = vadd.f32 %v814, 1.0
    %v816 = vrcp.pop %v815
    %v817 = vmul.f32 %v815, %v816
    %v818 = vsub.f32 1.0, %v817
    %v819 = vmul.f32 %v816, %v818
    %v820 = vadd.f32 %v816, %v819
    %vm821 = vweird.f32 %v815
    %vm822 = vweird.f32 %v816
    %vm823 = vmor %vm821, %vm822
    %v824 = vsel %vm823, %v816, %v820
    %v825 = vand.u32 2147483647, %v815
    %vm826 = vcmp.eq.f32.partialorder %v825, 8.507059e+37
    %v827 = vand.u32 %v815, 2147483648
    %v828 = vor.u32 1.1754944e-38, %v827
    %v829 = vsel %vm826, %v828, %v824
    %v830 = vmul.f32 %v805, %v829
    %v831 = vmin.f32 %v830, 1.0
    %v832 = vmax.f32 %v831, -1.0
    %v833 = vmul.f32 %v792, %v792
    %v834 = vmin.f32 16.0, %v833
    %v835 = vmul.f32 %v834, 2.1237322e-06
    %v836 = vadd.f32 %v835, 0.00028619796
    %v837 = vmul.f32 %v834, %v836
    %v838 = vadd.f32 %v837, 0.0036580483
    %v839 = vmul.f32 %v834, %v838
    %v840 = vadd.f32 %v839, 0.05243302
    %v841 = vmul.f32 %v834, %v840
    %v842 = vadd.f32 %v841, 0.18741608
    %v843 = vmul.f32 %v834, %v842
    %v844 = vadd.f32 %v843, 1.1283791
    %v845 = vmul.f32 %v792, %v844
    %v846 = vmul.f32 %v834, 3.8918573e-05
    %v847 = vadd.f32 %v846, 0.001143296
    %v848 = vmul.f32 %v834, %v847
    %v849 = vadd.f32 %v848, 0.014752088
    %v850 = vmul.f32 %v834, %v849
    %v851 = vadd.f32 %v850, 0.112945676
    %v852 = vmul.f32 %v834, %v851
    %v853 = vadd.f32 %v852, 0.4994258
    %v854 = vmul.f32 %v834, %v853
    %v855 = vadd.f32 %v854, 1.0
    %v856 = vrcp.pop %v855
    %v857 = vmul.f32 %v855, %v856
    %v858 = vsub.f32 1.0, %v857
    %v859 = vmul.f32 %v856, %v858
    %v860 = vadd.f32 %v856, %v859
    %vm861 = vweird.f32 %v855
    %vm862 = vweird.f32 %v856
    %vm863 = vmor %vm861, %vm862
    %v864 = vsel %vm863, %v856, %v860
    %v865 = vand.u32 2147483647, %v855
    %vm866 = vcmp.eq.f32.partialorder %v865, 8.507059e+37
    %v867 = vand.u32 %v855, 2147483648
    %v868 = vor.u32 1.1754944e-38, %v867
    %v869 = vsel %vm866, %v868, %v864
    %v870 = vmul.f32 %v845, %v869
    %v871 = vmin.f32 %v870, 1.0
    %v872 = vmax.f32 %v871, -1.0
    %v873 = vadd.f32 %v832, 1.0
    %v874 = vadd.f32 %v872, 1.0
    %v875 = vmul.f32 %v789, %v873
    %v876 = vmul.f32 %v790, %v874
    %v877 = vld [vmem:[%s11] sm:$0xff]
    %v878 = vld [vmem:[%s11 + $0x8] sm:$0xff]
    %v879 = vld [vmem:[%s11 + $0x10] sm:$0xff]
    %v880 = vld [vmem:[%s11 + $0x18] sm:$0xff]
    %v881 = vld [vmem:[%s11 + $0x20] sm:$0xff]
    %v882 = vld [vmem:[%s11 + $0x28] sm:$0xff]
    %v883 = vld [vmem:[%s11 + $0x30] sm:$0xff]
    %v884 = vld [vmem:[%s11 + $0x38] sm:$0xff]
    %v885 = vld [vmem:[%s11 + $0x40] sm:$0xff]
    %v886 = vld [vmem:[%s11 + $0x48] sm:$0xff]
    %v887 = vld [vmem:[%s11 + $0x50] sm:$0xff]
    %v888 = vld [vmem:[%s11 + $0x58] sm:$0xff]
    %v889 = vld [vmem:[%s11 + $0x60] sm:$0xff]
    %v890 = vld [vmem:[%s11 + $0x68] sm:$0xff]
    %v891 = vld [vmem:[%s11 + $0x70] sm:$0xff]
    %v892 = vld [vmem:[%s11 + $0x78] sm:$0xff]
    %v893 = vperm.slane %v66, 5
    %894 = vmatpush.msra.mxu0 %v892
    %895 = vmatpush.msra.mxu0 %v891
    %896 = vmatpush.msra.mxu0 %v890
    %897 = vmatpush.msra.mxu0 %v889
    %898 = vmatpush.msra.mxu0 %v888
    %899 = vmatpush.msra.mxu0 %v887
    %900 = vmatpush.msra.mxu0 %v886
    %901 = vmatpush.msra.mxu0 %v885
    %902 = vmatpush.msra.mxu0 %v884
    %903 = vmatpush.msra.mxu0 %v883
    %904 = vmatpush.msra.mxu0 %v882
    %905 = vmatpush.msra.mxu0 %v881
    %906 = vmatpush.msra.mxu0 %v880
    %907 = vmatpush.msra.mxu0 %v879
    %908 = vmatpush.msra.mxu0 %v878
    %909 = vmatpush.msra.mxu0 %v877
    %910 = vmatmul.f32.gmra.mxu0 %v875
    %v911 = vpop.f32.mrf.mxu0
    %v912 = vadd.f32 %v893, %v911
    %913 = vmatmul.f32.gmra.mxu0 %v876
    %v914 = vpop.f32.mrf.mxu0
    %v915 = vadd.f32 %v893, %v914
    %916 = vdwg.mxu0
    %v917 = vadd.f32 %v750, %v912
    %v918 = vadd.f32 %v751, %v915
    %v919 = vsel %vm128, %v917, 0.0
    %920 = vadd.xlane.f32.xlu0 %v919
    %v921 = vpop.xlane.xlu0 %920
    %v922 = vsel %vm128, %v918, 0.0
    %923 = vadd.xlane.f32.xlu0 %v922
    %v924 = vpop.xlane.xlu0 %923
    %v925 = vmul.f32 %v921, %v141
    %v926 = vmul.f32 %v924, %v141
    %v927 = vsub.f32 %v917, %v925
    %v928 = vsub.f32 %v918, %v926
    %v929 = vmul.f32 %v927, %v927
    %v930 = vmul.f32 %v928, %v928
    %v931 = vsel %vm128, %v929, 0.0
    %932 = vadd.xlane.f32.xlu0 %v931
    %v933 = vpop.xlane.xlu0 %932
    %v934 = vsel %vm128, %v930, 0.0
    %935 = vadd.xlane.f32.xlu0 %v934
    %v936 = vpop.xlane.xlu0 %935
    %v937 = vmul.f32 %v933, %v141
    %v938 = vmul.f32 %v936, %v141
    %v939 = vadd.f32 %v937, 1e-12
    %v940 = vadd.f32 %v938, 1e-12
    %v941 = vrsqrt.pop %v939
    %v942 = vmul.f32 %v941, %v939
    %v943 = vmul.f32 %v942, %v941
    %v944 = vmul.f32 0.5, %v943
    %v945 = vsub.f32 1.5, %v944
    %v946 = vmul.f32 %v941, %v945
    %vm947 = vweird.f32 %v939
    %vm948 = vweird.f32 %v941
    %vm949 = vmor %vm947, %vm948
    %v950 = vsel %vm949, %v941, %v946
    %v951 = vrsqrt.pop %v940
    %v952 = vmul.f32 %v951, %v940
    %v953 = vmul.f32 %v952, %v951
    %v954 = vmul.f32 0.5, %v953
    %v955 = vsub.f32 1.5, %v954
    %v956 = vmul.f32 %v951, %v955
    %vm957 = vweird.f32 %v940
    %vm958 = vweird.f32 %v951
    %vm959 = vmor %vm957, %vm958
    %v960 = vsel %vm959, %v951, %v956
    %v961 = vmul.f32 %v927, %v950
    %v962 = vmul.f32 %v928, %v960
    %v963 = vperm.slane %v66, 6
    %v964 = vmul.f32 %v961, %v963
    %v965 = vmul.f32 %v962, %v963
    %v966 = vperm.slane %v66, 7
    %v967 = vadd.f32 %v964, %v966
    %v968 = vadd.f32 %v965, %v966
    %v969 = vld [vmem:[%s12] sm:$0xff]
    %v970 = vld [vmem:[%s12 + $0x8] sm:$0xff]
    %v971 = vld [vmem:[%s12 + $0x10] sm:$0xff]
    %v972 = vld [vmem:[%s12 + $0x18] sm:$0xff]
    %v973 = vperm.slane %v68, 0
    %v975 = vsel %vm128, %v967, 0
    %v978 = vsel %vm128, %v968, 0
    %980 = vmatpush.msra.mxu0 0.0
    %981 = vmatpush.msra.mxu0 0.0
    %982 = vmatpush.msra.mxu0 0.0
    %983 = vmatpush.msra.mxu0 0.0
    %984 = vmatpush.msra.mxu0 0.0
    %985 = vmatpush.msra.mxu0 0.0
    %986 = vmatpush.msra.mxu0 0.0
    %987 = vmatpush.msra.mxu0 0.0
    %988 = vmatpush.msra.mxu0 0.0
    %989 = vmatpush.msra.mxu0 0.0
    %990 = vmatpush.msra.mxu0 0.0
    %991 = vmatpush.msra.mxu0 0.0
    %992 = vmatpush.msra.mxu0 %v972
    %993 = vmatpush.msra.mxu0 %v971
    %994 = vmatpush.msra.mxu0 %v970
    %995 = vmatpush.msra.mxu0 %v969
    %996 = vmatmul.f32.gmra.mxu0 %v975
    %v997 = vpop.f32.mrf.mxu0
    %v998 = vadd.f32 %v973, %v997
    %999 = vmatmul.f32.gmra.mxu0 %v978
    %v1000 = vpop.f32.mrf.mxu0
    %v1001 = vadd.f32 %v973, %v1000
    %1002 = vdwg.mxu0
    %v1003 = vtanh.pop %v998
    %v1004 = vtanh.pop %v1001
    %v1005 = vld [vmem:[%s13] sm:$0xff]
    %v1006 = vld [vmem:[%s13 + $0x8] sm:$0xff]
    %v1007 = vperm.slane %v68, 4
    %v1009 = vsel %vm277, %v1003, 0
    %v1012 = vsel %vm277, %v1004, 0
    %1014 = vmatpush.msra.mxu0 0.0
    %1015 = vmatpush.msra.mxu0 0.0
    %1016 = vmatpush.msra.mxu0 0.0
    %1017 = vmatpush.msra.mxu0 0.0
    %1018 = vmatpush.msra.mxu0 0.0
    %1019 = vmatpush.msra.mxu0 0.0
    %1020 = vmatpush.msra.mxu0 0.0
    %1021 = vmatpush.msra.mxu0 0.0
    %1022 = vmatpush.msra.mxu0 0.0
    %1023 = vmatpush.msra.mxu0 0.0
    %1024 = vmatpush.msra.mxu0 0.0
    %1025 = vmatpush.msra.mxu0 0.0
    %1026 = vmatpush.msra.mxu0 0.0
    %1027 = vmatpush.msra.mxu0 0.0
    %1028 = vmatpush.msra.mxu0 %v1006
    %1029 = vmatpush.msra.mxu0 %v1005
    %1030 = vmatmul.f32.gmra.mxu0 %v1009
    %v1031 = vpop.f32.mrf.mxu0
    %v1032 = vadd.f32 %v1007, %v1031
    %1033 = vmatmul.f32.gmra.mxu0 %v1012
    %v1034 = vpop.f32.mrf.mxu0
    %v1035 = vadd.f32 %v1007, %v1034
    %1036 = vdwg.mxu0
    %vm1037 = vcmask 7168
    %v1038 = vsel %vm1037, %v1032, -inf
    %v1039 = vsel %vm1037, %v1035, -inf
    %v1040 = vmax.f32 %v1038, %v1039
    %v1041 = vrot.slane %v1040, 4
    %v1042 = vmax.f32 %v1040, %v1041
    %v1043 = vrot.slane %v1042, 2
    %v1044 = vmax.f32 %v1042, %v1043
    %v1045 = vrot.slane %v1044, 1
    %v1046 = vmax.f32 %v1044, %v1045
    %v1047 = vsub.f32 %v1032, %v1046
    %v1048 = vsub.f32 %v1035, %v1046
    %v1049 = vmul.f32 %v1047, 1.442695
    %v1050 = vpow.pop %v1049
    %v1051 = vmul.f32 %v1048, 1.442695
    %v1052 = vpow.pop %v1051
    %v1054 = vsel %vm277, %v187, 0
    %v1057 = vsel %vm277, %v188, 0
    %1059 = vmatpush.msra.mxu0 0.0
    %1060 = vmatpush.msra.mxu0 0.0
    %1061 = vmatpush.msra.mxu0 0.0
    %1062 = vmatpush.msra.mxu0 0.0
    %1063 = vmatpush.msra.mxu0 0.0
    %1064 = vmatpush.msra.mxu0 0.0
    %1065 = vmatpush.msra.mxu0 0.0
    %1066 = vmatpush.msra.mxu0 0.0
    %1067 = vmatpush.msra.mxu0 0.0
    %1068 = vmatpush.msra.mxu0 0.0
    %1069 = vmatpush.msra.mxu0 0.0
    %1070 = vmatpush.msra.mxu0 0.0
    %1071 = vmatpush.msra.mxu0 0.0
    %1072 = vmatpush.msra.mxu0 0.0
    %1073 = vmatpush.msra.mxu0 %v1052
    %1074 = vmatpush.msra.mxu0 %v1050
    %1075 = vmatmul.f32.gmra.mxu0 %v1054
    %v1076 = vpop.f32.mrf.mxu0
    %v1077 = vadd.f32 0.0, %v1076
    %1078 = vmatmul.f32.gmra.mxu0 %v1057
    %v1079 = vpop.f32.mrf.mxu0
    %v1080 = vadd.f32 0.0, %v1079
    %1081 = vdwg.mxu0
    %v1082 = vrcp.pop %v1077
    %v1083 = vrcp.pop %v1080
    %v1084 = vmul.f32 %v1050, %v1082
    %v1085 = vmul.f32 %v1052, %v1083
    %v1086 = vld [vmem:[%s5] sm:$0x3]
    %1088 = vset.pattern.permute.xlu0 0
    %1089 = vperm.xlu0 %1088, %v1084
    %v1090 = vpop.permute.xlu0 %1089
    %1093 = vset.pattern.permute.xlu0 0
    %1094 = vperm.xlu0 %1093, %v1085
    %v1095 = vpop.permute.xlu0 %1094
    %v1097 = vmul.f32 %v1090, %v967
    %v1098 = vmul.f32 %v1095, %v968
    %v1100 = vsel %vm277, %v1086, 0
    %1102 = vmatpush.msra.mxu0 0.0
    %1103 = vmatpush.msra.mxu0 0.0
    %1104 = vmatpush.msra.mxu0 0.0
    %1105 = vmatpush.msra.mxu0 0.0
    %1106 = vmatpush.msra.mxu0 0.0
    %1107 = vmatpush.msra.mxu0 0.0
    %1108 = vmatpush.msra.mxu0 0.0
    %1109 = vmatpush.msra.mxu0 0.0
    %1110 = vmatpush.msra.mxu0 0.0
    %1111 = vmatpush.msra.mxu0 0.0
    %1112 = vmatpush.msra.mxu0 0.0
    %1113 = vmatpush.msra.mxu0 0.0
    %1114 = vmatpush.msra.mxu0 0.0
    %1115 = vmatpush.msra.mxu0 0.0
    %1116 = vmatpush.msra.mxu0 %v1098
    %1117 = vmatpush.msra.mxu0 %v1097
    %1118 = vmatmul.f32.gmra.mxu0 %v1100
    %v1119 = vpop.f32.mrf.mxu0
    %v1120 = vadd.f32 0.0, %v1119
    %1121 = vdwg.mxu0
    %v1122 = vld [vmem:[%s14] sm:$0xff]
    %v1123 = vld [vmem:[%s14 + $0x8] sm:$0xff]
    %v1124 = vld [vmem:[%s14 + $0x10] sm:$0xff]
    %v1125 = vld [vmem:[%s14 + $0x18] sm:$0xff]
    %v1126 = vperm.slane %v67, 0
    %v1128 = vsel %vm128, %v1120, 0
    %1130 = vmatpush.msra.mxu0 0.0
    %1131 = vmatpush.msra.mxu0 0.0
    %1132 = vmatpush.msra.mxu0 0.0
    %1133 = vmatpush.msra.mxu0 0.0
    %1134 = vmatpush.msra.mxu0 0.0
    %1135 = vmatpush.msra.mxu0 0.0
    %1136 = vmatpush.msra.mxu0 0.0
    %1137 = vmatpush.msra.mxu0 0.0
    %1138 = vmatpush.msra.mxu0 0.0
    %1139 = vmatpush.msra.mxu0 0.0
    %1140 = vmatpush.msra.mxu0 0.0
    %1141 = vmatpush.msra.mxu0 0.0
    %1142 = vmatpush.msra.mxu0 %v1125
    %1143 = vmatpush.msra.mxu0 %v1124
    %1144 = vmatpush.msra.mxu0 %v1123
    %1145 = vmatpush.msra.mxu0 %v1122
    %1146 = vmatmul.f32.gmra.mxu0 %v1128
    %v1147 = vpop.f32.mrf.mxu0
    %v1148 = vadd.f32 %v1126, %v1147
    %1149 = vdwg.mxu0
    %vm1150 = vcmask 254976
    %v1151 = vsel %vm1150, %v1148, 0.0
    %1152 = vadd.xlane.f32.xlu0 %v1151
    %v1153 = vpop.xlane.xlu0 %1152
    %v1154 = vmul.f32 %v1153, %v141
    %v1155 = vsub.f32 %v1148, %v1154
    %v1156 = vmul.f32 %v1155, %v1155
    %v1157 = vsel %vm1150, %v1156, 0.0
    %1158 = vadd.xlane.f32.xlu0 %v1157
    %v1159 = vpop.xlane.xlu0 %1158
    %v1160 = vmul.f32 %v1159, %v141
    %v1161 = vadd.f32 %v1160, 1e-05
    %v1162 = vrsqrt.pop %v1161
    %v1163 = vmul.f32 %v1162, %v1161
    %v1164 = vmul.f32 %v1163, %v1162
    %v1165 = vmul.f32 0.5, %v1164
    %v1166 = vsub.f32 1.5, %v1165
    %v1167 = vmul.f32 %v1162, %v1166
    %vm1168 = vweird.f32 %v1161
    %vm1169 = vweird.f32 %v1162
    %vm1170 = vmor %vm1168, %vm1169
    %v1171 = vsel %vm1170, %v1162, %v1167
    %v1172 = vmul.f32 %v1155, %v1171
    %v1173 = vperm.slane %v67, 1
    %v1174 = vmul.f32 %v1172, %v1173
    %v1175 = vperm.slane %v67, 2
    %v1176 = vadd.f32 %v1174, %v1175
    %v1177 = vmul.f32 %v1176, 0.5
    %v1178 = vmul.f32 %v1176, 0.70710677
    %v1179 = vmul.f32 %v1178, %v1178
    %v1180 = vmin.f32 16.0, %v1179
    %v1181 = vmul.f32 %v1180, 2.1237322e-06
    %v1182 = vadd.f32 %v1181, 0.00028619796
    %v1183 = vmul.f32 %v1180, %v1182
    %v1184 = vadd.f32 %v1183, 0.0036580483
    %v1185 = vmul.f32 %v1180, %v1184
    %v1186 = vadd.f32 %v1185, 0.05243302
    %v1187 = vmul.f32 %v1180, %v1186
    %v1188 = vadd.f32 %v1187, 0.18741608
    %v1189 = vmul.f32 %v1180, %v1188
    %v1190 = vadd.f32 %v1189, 1.1283791
    %v1191 = vmul.f32 %v1178, %v1190
    %v1192 = vmul.f32 %v1180, 3.8918573e-05
    %v1193 = vadd.f32 %v1192, 0.001143296
    %v1194 = vmul.f32 %v1180, %v1193
    %v1195 = vadd.f32 %v1194, 0.014752088
    %v1196 = vmul.f32 %v1180, %v1195
    %v1197 = vadd.f32 %v1196, 0.112945676
    %v1198 = vmul.f32 %v1180, %v1197
    %v1199 = vadd.f32 %v1198, 0.4994258
    %v1200 = vmul.f32 %v1180, %v1199
    %v1201 = vadd.f32 %v1200, 1.0
    %v1202 = vrcp.pop %v1201
    %v1203 = vmul.f32 %v1201, %v1202
    %v1204 = vsub.f32 1.0, %v1203
    %v1205 = vmul.f32 %v1202, %v1204
    %v1206 = vadd.f32 %v1202, %v1205
    %vm1207 = vweird.f32 %v1201
    %vm1208 = vweird.f32 %v1202
    %vm1209 = vmor %vm1207, %vm1208
    %v1210 = vsel %vm1209, %v1202, %v1206
    %v1211 = vand.u32 2147483647, %v1201
    %vm1212 = vcmp.eq.f32.partialorder %v1211, 8.507059e+37
    %v1213 = vand.u32 %v1201, 2147483648
    %v1214 = vor.u32 1.1754944e-38, %v1213
    %v1215 = vsel %vm1212, %v1214, %v1210
    %v1216 = vmul.f32 %v1191, %v1215
    %v1217 = vmin.f32 %v1216, 1.0
    %v1218 = vmax.f32 %v1217, -1.0
    %v1219 = vadd.f32 %v1218, 1.0
    %v1220 = vmul.f32 %v1177, %v1219
    %v1221 = vld [vmem:[%s15] sm:$0xff]
    %v1222 = vld [vmem:[%s15 + $0x8] sm:$0xff]
    %v1223 = vld [vmem:[%s15 + $0x10] sm:$0xff]
    %v1224 = vld [vmem:[%s15 + $0x18] sm:$0xff]
    %v1225 = vperm.slane %v68, 1
    %v1227 = vsel %vm128, %v1220, 0
    %1229 = vmatpush.msra.mxu0 0.0
    %1230 = vmatpush.msra.mxu0 0.0
    %1231 = vmatpush.msra.mxu0 0.0
    %1232 = vmatpush.msra.mxu0 0.0
    %1233 = vmatpush.msra.mxu0 0.0
    %1234 = vmatpush.msra.mxu0 0.0
    %1235 = vmatpush.msra.mxu0 0.0
    %1236 = vmatpush.msra.mxu0 0.0
    %1237 = vmatpush.msra.mxu0 0.0
    %1238 = vmatpush.msra.mxu0 0.0
    %1239 = vmatpush.msra.mxu0 0.0
    %1240 = vmatpush.msra.mxu0 0.0
    %1241 = vmatpush.msra.mxu0 %v1224
    %1242 = vmatpush.msra.mxu0 %v1223
    %1243 = vmatpush.msra.mxu0 %v1222
    %1244 = vmatpush.msra.mxu0 %v1221
    %1245 = vmatmul.f32.gmra.mxu0 %v1227
    %v1246 = vpop.f32.mrf.mxu0
    %v1247 = vadd.f32 %v1225, %v1246
    %1248 = vdwg.mxu0
    %vm1249 = vcmask 123904
    %v1250 = vsel %vm1249, %v1247, 0.0
    %1251 = vadd.xlane.f32.xlu0 %v1250
    %v1252 = vpop.xlane.xlu0 %1251
    %v1253 = vrcp.pop 16.0
    %v1254 = vmul.f32 16.0, %v1253
    %v1255 = vsub.f32 1.0, %v1254
    %v1256 = vmul.f32 %v1253, %v1255
    %v1257 = vadd.f32 %v1253, %v1256
    %vm1258 = vweird.f32 %v1253
    %v1259 = vsel %vm1258, %v1253, %v1257
    %v1260 = vmul.f32 %v1252, %v1259
    %v1261 = vsub.f32 %v1247, %v1260
    %v1262 = vmul.f32 %v1261, %v1261
    %v1263 = vsel %vm1249, %v1262, 0.0
    %1264 = vadd.xlane.f32.xlu0 %v1263
    %v1265 = vpop.xlane.xlu0 %1264
    %v1266 = vmul.f32 %v1265, %v1259
    %v1267 = vadd.f32 %v1266, 1e-05
    %v1268 = vrsqrt.pop %v1267
    %v1269 = vmul.f32 %v1268, %v1267
    %v1270 = vmul.f32 %v1269, %v1268
    %v1271 = vmul.f32 0.5, %v1270
    %v1272 = vsub.f32 1.5, %v1271
    %v1273 = vmul.f32 %v1268, %v1272
    %vm1274 = vweird.f32 %v1267
    %vm1275 = vweird.f32 %v1268
    %vm1276 = vmor %vm1274, %vm1275
    %v1277 = vsel %vm1276, %v1268, %v1273
    %v1278 = vmul.f32 %v1261, %v1277
    %v1279 = vperm.slane %v68, 2
    %v1280 = vmul.f32 %v1278, %v1279
    %v1281 = vperm.slane %v68, 3
    %v1282 = vadd.f32 %v1280, %v1281
    %v1283 = vmul.f32 %v1282, 0.5
    %v1284 = vmul.f32 %v1282, 0.70710677
    %v1285 = vmul.f32 %v1284, %v1284
    %v1286 = vmin.f32 16.0, %v1285
    %v1287 = vmul.f32 %v1286, 2.1237322e-06
    %v1288 = vadd.f32 %v1287, 0.00028619796
    %v1289 = vmul.f32 %v1286, %v1288
    %v1290 = vadd.f32 %v1289, 0.0036580483
    %v1291 = vmul.f32 %v1286, %v1290
    %v1292 = vadd.f32 %v1291, 0.05243302
    %v1293 = vmul.f32 %v1286, %v1292
    %v1294 = vadd.f32 %v1293, 0.18741608
    %v1295 = vmul.f32 %v1286, %v1294
    %v1296 = vadd.f32 %v1295, 1.1283791
    %v1297 = vmul.f32 %v1284, %v1296
    %v1298 = vmul.f32 %v1286, 3.8918573e-05
    %v1299 = vadd.f32 %v1298, 0.001143296
    %v1300 = vmul.f32 %v1286, %v1299
    %v1301 = vadd.f32 %v1300, 0.014752088
    %v1302 = vmul.f32 %v1286, %v1301
    %v1303 = vadd.f32 %v1302, 0.112945676
    %v1304 = vmul.f32 %v1286, %v1303
    %v1305 = vadd.f32 %v1304, 0.4994258
    %v1306 = vmul.f32 %v1286, %v1305
    %v1307 = vadd.f32 %v1306, 1.0
    %v1308 = vrcp.pop %v1307
    %v1309 = vmul.f32 %v1307, %v1308
    %v1310 = vsub.f32 1.0, %v1309
    %v1311 = vmul.f32 %v1308, %v1310
    %v1312 = vadd.f32 %v1308, %v1311
    %vm1313 = vweird.f32 %v1307
    %vm1314 = vweird.f32 %v1308
    %vm1315 = vmor %vm1313, %vm1314
    %v1316 = vsel %vm1315, %v1308, %v1312
    %v1317 = vand.u32 2147483647, %v1307
    %vm1318 = vcmp.eq.f32.partialorder %v1317, 8.507059e+37
    %v1319 = vand.u32 %v1307, 2147483648
    %v1320 = vor.u32 1.1754944e-38, %v1319
    %v1321 = vsel %vm1318, %v1320, %v1316
    %v1322 = vmul.f32 %v1297, %v1321
    %v1323 = vmin.f32 %v1322, 1.0
    %v1324 = vmax.f32 %v1323, -1.0
    %v1325 = vadd.f32 %v1324, 1.0
    %v1326 = vmul.f32 %v1283, %v1325
    %v1327 = vld [vmem:[%s16] sm:$0xff]
    %v1328 = vld [vmem:[%s16 + $0x8] sm:$0xff]
    %v1329 = vld [vmem:[%s17] sm:$0x1]
    %v1331 = vperm.slane %v1329, 0
    %v1334 = vsel %vm277, %v1326, 0
    %1336 = vmatpush.msra.mxu0 0.0
    %1337 = vmatpush.msra.mxu0 0.0
    %1338 = vmatpush.msra.mxu0 0.0
    %1339 = vmatpush.msra.mxu0 0.0
    %1340 = vmatpush.msra.mxu0 0.0
    %1341 = vmatpush.msra.mxu0 0.0
    %1342 = vmatpush.msra.mxu0 0.0
    %1343 = vmatpush.msra.mxu0 0.0
    %1344 = vmatpush.msra.mxu0 0.0
    %1345 = vmatpush.msra.mxu0 0.0
    %1346 = vmatpush.msra.mxu0 0.0
    %1347 = vmatpush.msra.mxu0 0.0
    %1348 = vmatpush.msra.mxu0 0.0
    %1349 = vmatpush.msra.mxu0 0.0
    %1350 = vmatpush.msra.mxu0 %v1328
    %1351 = vmatpush.msra.mxu0 %v1327
    %1352 = vmatmul.f32.gmra.mxu0 %v1334
    %v1353 = vpop.f32.mrf.mxu0
    %v1354 = vadd.f32 %v1331, %v1353
    %1355 = vdwg.mxu0
    %1356 = vst [vmem:[#allocation2] sm:$0x3] %v1354
    // Predicated region
    $region82: #{sentimental_classifier.1} parent=1 // pred_check
      _
    $region83: #{sentimental_classifier.1} parent=1 // pred_check_branch
      %1358 = sbr.rel (0) target = $region85
    $region84: #{sentimental_classifier.1} parent=1 // pred_region
      %1360 = vsyncadd [#allocation3], 0
      %s1362 = sshll.u32 [#allocation2], 4
      %s1363 = int_to_ptr.vmem [resolvable:$true] %s1362
      %s1364 = sshll.u32 %s20, 4
      %s1365 = int_to_ptr.hbm [resolvable:$true] %s1364
      %1367 = dma.vmem_to_hbm [thread:$0]  %s1363, 32, %s1365, [#allocation3]
    $region85: #{sentimental_classifier.1} parent=1 // pred_fallthru
      _
    // Predicated region
    $region86: #{sentimental_classifier.1} parent=1 // pred_check
      _
    $region87: #{sentimental_classifier.1} parent=1 // pred_check_branch
      %1369 = sbr.rel (0) target = $region89
    $region88: #{sentimental_classifier.1} parent=1 // pred_region
      %1371 = dma.done [#allocation3], 32
    $region89: #{sentimental_classifier.1} parent=1 // pred_fallthru
      _
    %1372 = vsyncpa [#allocation3], 1

</llo_original>
